<compile_context>
chip_gen: v6e
topology: v6e:2x2x1
jax: 0.10.0
libtpu: 0.0.40
codegen_flags: <defaults>
</compile_context>

<pallas_src>
import functools

import jax
import jax.numpy as jnp
from jax import lax
from jax.experimental import pallas as pl
from jax.experimental.pallas import tpu as pltpu


def _round_up(x, m):
    return ((x + m - 1) // m) * m


_SMEM_SPEC = pl.BlockSpec(memory_space=pltpu.MemorySpace.SMEM)
_VMEM_LIMIT = 32 * 1024 * 1024  # well above actual use; safe on v5e/v6e/v7x


# ----------------------------------------------------------------------------
# Kernel 1: lin_n2e  (node features -> hidden), tiled over node rows.
# ----------------------------------------------------------------------------
def _lin_n2e_kernel(x_ref, w1_ref, b1_ref, xe_ref):
    xe_ref[...] = (
        jnp.dot(x_ref[...], w1_ref[...], preferred_element_type=jnp.float32)
        + b1_ref[...]
    )


def lin_n2e(x, w1, b1, *, tile_n):
    n_pad, in_dim = x.shape
    hid = w1.shape[1]
    return pl.pallas_call(
        _lin_n2e_kernel,
        out_shape=jax.ShapeDtypeStruct((n_pad, hid), jnp.float32),
        grid_spec=pltpu.PrefetchScalarGridSpec(
            num_scalar_prefetch=0,
            grid=(n_pad // tile_n,),
            in_specs=[
                pl.BlockSpec((tile_n, in_dim), lambda i: (i, 0)),
                pl.BlockSpec((in_dim, hid), lambda i: (0, 0)),   # resident weights
                pl.BlockSpec((1, hid), lambda i: (0, 0)),
            ],
            out_specs=pl.BlockSpec((tile_n, hid), lambda i: (i, 0)),
        ),
        compiler_params=pltpu.CompilerParams(
            dimension_semantics=("parallel",),
            vmem_limit_bytes=_VMEM_LIMIT,
        ),
        cost_estimate=pl.CostEstimate(
            flops=2 * n_pad * in_dim * hid,
            transcendentals=0,
            bytes_accessed=4 * (n_pad * in_dim + in_dim * hid + n_pad * hid),
        ),
    )(x, w1, b1)


# ----------------------------------------------------------------------------
# Kernel 2: node -> hyperedge aggregation (H^T @ xe), degree norm, PReLU.
# Grid = (edge tiles [parallel], node tiles [arbitrary, contraction]).
# ----------------------------------------------------------------------------
def _n2e_agg_kernel(h_ref, xe_ref, de_inv_ref, a_conv_ref, e_ref, acc_ref):
    ni = pl.program_id(1)

    @pl.when(ni == 0)
    def _():
        acc_ref[...] = jnp.zeros_like(acc_ref)

    # Transposed contraction of H: contract the node axis of the (tile_n, tile_e)
    # incidence block against xe -- no explicit H^T array is ever built or DMA'd.
    acc_ref[...] += lax.dot_general(
        h_ref[...].astype(jnp.float32),
        xe_ref[...],
        dimension_numbers=(((0,), (0,)), ((), ())),
        preferred_element_type=jnp.float32,
    )

    @pl.when(ni == pl.num_programs(1) - 1)
    def _():
        a_c = a_conv_ref[0]
        e = acc_ref[...] * de_inv_ref[...]
        e_ref[...] = jnp.where(e >= 0.0, e, a_c * e)
        # TODO(synk): F.dropout on e omitted -- forward path uses dropout_rate=0.0.


def n2e_aggregate(h_bf16, xe, de_inv, a_conv, *, tile_n, tile_e):
    n_pad, e_pad = h_bf16.shape
    hid = xe.shape[1]
    return pl.pallas_call(
        _n2e_agg_kernel,
        out_shape=jax.ShapeDtypeStruct((e_pad, hid), jnp.float32),
        grid_spec=pltpu.PrefetchScalarGridSpec(
            num_scalar_prefetch=0,
            grid=(e_pad // tile_e, n_pad // tile_n),
            in_specs=[
                pl.BlockSpec((tile_n, tile_e), lambda ei, ni: (ni, ei)),
                pl.BlockSpec((tile_n, hid), lambda ei, ni: (ni, 0)),
                pl.BlockSpec((tile_e, 1), lambda ei, ni: (ei, 0)),
                _SMEM_SPEC,
            ],
            out_specs=pl.BlockSpec((tile_e, hid), lambda ei, ni: (ei, 0)),
            scratch_shapes=[pltpu.VMEM((tile_e, hid), jnp.float32)],
        ),
        compiler_params=pltpu.CompilerParams(
            dimension_semantics=("parallel", "arbitrary"),
            vmem_limit_bytes=_VMEM_LIMIT,
        ),
        cost_estimate=pl.CostEstimate(
            flops=2 * n_pad * e_pad * hid,
            transcendentals=0,
            bytes_accessed=2 * n_pad * e_pad + 4 * (n_pad * hid + e_pad * hid),
        ),
    )(h_bf16, xe, de_inv, a_conv)


# ----------------------------------------------------------------------------
# Kernel 3: hyperedge -> node aggregation (H @ e), self-loop term, degree norm,
# lin_e2n, shared HGNN PReLU.
# Grid = (node tiles [parallel], edge tiles [arbitrary, contraction]).
# ----------------------------------------------------------------------------
def _e2n_agg_kernel(h_ref, e_ref, xe_ref, dn_inv_ref, w2_ref, b2_ref,
                    a_conv_ref, a_out_ref, n_ref, acc_ref):
    ei = pl.program_id(1)

    @pl.when(ei == 0)
    def _():
        acc_ref[...] = jnp.zeros_like(acc_ref)

    acc_ref[...] += jnp.dot(
        h_ref[...].astype(jnp.float32), e_ref[...],
        preferred_element_type=jnp.float32,
    )

    @pl.when(ei == pl.num_programs(1) - 1)
    def _():
        a_c = a_conv_ref[0]
        xe = xe_ref[...]
        # Self-loop hyperedges handled algebraically: each has edge degree 1, so
        # its post-PReLU embedding is PReLU(xe) and it lands on its own node only.
        e_self = jnp.where(xe >= 0.0, xe, a_c * xe)
        xn = (acc_ref[...] + e_self) * dn_inv_ref[...]
        n = jnp.dot(xn, w2_ref[...], preferred_element_type=jnp.float32) + b2_ref[...]
        a_o = a_out_ref[0]
        n_ref[...] = jnp.where(n >= 0.0, n, a_o * n)


def e2n_aggregate(h_bf16, e, xe, dn_inv, w2, b2, a_conv, a_out, *, tile_n, tile_e):
    n_pad, e_pad = h_bf16.shape
    hid = e.shape[1]
    out_dim = w2.shape[1]
    return pl.pallas_call(
        _e2n_agg_kernel,
        out_shape=jax.ShapeDtypeStruct((n_pad, out_dim), jnp.float32),
        grid_spec=pltpu.PrefetchScalarGridSpec(
            num_scalar_prefetch=0,
            grid=(n_pad // tile_n, e_pad // tile_e),
            in_specs=[
                pl.BlockSpec((tile_n, tile_e), lambda ni, ei: (ni, ei)),
                pl.BlockSpec((tile_e, hid), lambda ni, ei: (ei, 0)),
                pl.BlockSpec((tile_n, hid), lambda ni, ei: (ni, 0)),
                pl.BlockSpec((tile_n, 1), lambda ni, ei: (ni, 0)),
                pl.BlockSpec((hid, out_dim), lambda ni, ei: (0, 0)),  # resident
                pl.BlockSpec((1, out_dim), lambda ni, ei: (0, 0)),
                _SMEM_SPEC,
                _SMEM_SPEC,
            ],
            out_specs=pl.BlockSpec((tile_n, out_dim), lambda ni, ei: (ni, 0)),
            scratch_shapes=[pltpu.VMEM((tile_n, hid), jnp.float32)],
        ),
        compiler_params=pltpu.CompilerParams(
            dimension_semantics=("parallel", "arbitrary"),
            vmem_limit_bytes=_VMEM_LIMIT,
        ),
        cost_estimate=pl.CostEstimate(
            flops=2 * n_pad * e_pad * hid + 2 * n_pad * hid * out_dim,
            transcendentals=0,
            bytes_accessed=2 * n_pad * e_pad
            + 4 * (e_pad * hid + 2 * n_pad * hid + hid * out_dim + n_pad * out_dim),
        ),
    )(h_bf16, e, xe, dn_inv, w2, b2, a_conv, a_out)


# ----------------------------------------------------------------------------
# Parameter construction (deterministic, PyTorch-Linear-style uniform init)
# ----------------------------------------------------------------------------
def _linear_params(key, fan_in, fan_out):
    kw, kb = jax.random.split(key)
    bound = 1.0 / jnp.sqrt(jnp.asarray(fan_in, jnp.float32))
    w = jax.random.uniform(kw, (fan_in, fan_out), jnp.float32, -bound, bound)
    b = jax.random.uniform(kb, (1, fan_out), jnp.float32, -bound, bound)
    return w, b


def make_params(key, in_dim, edge_dim, node_dim, num_layers=2):
    convs = []
    dims_in = [in_dim] + [node_dim] * (num_layers - 1)
    for i in range(num_layers):
        key, k1, k2 = jax.random.split(key, 3)
        w1, b1 = _linear_params(k1, dims_in[i], edge_dim)   # lin_n2e
        w2, b2 = _linear_params(k2, edge_dim, node_dim)     # lin_e2n
        convs.append(dict(w1=w1, b1=b1, w2=w2, b2=b2,
                          a_conv=jnp.full((1,), 0.25, jnp.float32)))  # PReLU default
    return dict(convs=convs, a_act=jnp.full((1,), 0.25, jnp.float32))  # shared HGNN PReLU


# ----------------------------------------------------------------------------
# FG_HGCL forward (glue in plain JAX: densify incidence, degrees, padding)
# ----------------------------------------------------------------------------
@functools.partial(jax.jit, static_argnums=(3, 4, 5, 6))
def fg_hgcl_forward(params, x, hyperedge_index, num_nodes, num_edges,
                    max_tile_n=512, max_tile_e=512):
    # tile sizes: lane-aligned, capped so H tiles stay small enough even for
    # v7x's 64 MiB VMEM; pad N / E up to a multiple of the tile.
    tile_n = min(max_tile_n, _round_up(num_nodes, 128))
    tile_e = min(max_tile_e, _round_up(num_edges, 128))
    n_pad = _round_up(num_nodes, tile_n)
    e_pad = _round_up(num_edges, tile_e)

    # Dense incidence matrix of the *original* hyperedges only (no identity block
    # for self-loops -- they are handled algebraically inside the e->n kernel).
    h = jnp.zeros((n_pad, e_pad), jnp.float32)
    h = h.at[hyperedge_index[0], hyperedge_index[1]].add(1.0)

    de = h.sum(axis=0)            # edge degree (original edges; self-loop edges have degree 1)
    dn = h.sum(axis=1) + 1.0      # node degree including its own self-loop edge
    de_inv = jnp.where(de > 0.0, 1.0 / de, 0.0)[:, None]
    dn_inv = (1.0 / dn)[:, None]

    h_bf16 = h.astype(jnp.bfloat16)   # 0/1 (small count) values: exact in bf16

    n_feat = jnp.zeros((n_pad, x.shape[1]), jnp.float32).at[:num_nodes].set(
        x.astype(jnp.float32))

    # TODO(synk): gaussian input noise omitted -- forward path uses noise_std=0.0.
    e = None
    for layer in params["convs"]:
        xe = lin_n2e(n_feat, layer["w1"], layer["b1"], tile_n=tile_n)
        e = n2e_aggregate(h_bf16, xe, de_inv, layer["a_conv"],
                          tile_n=tile_n, tile_e=tile_e)
        n_feat = e2n_aggregate(h_bf16, e, xe, dn_inv,
                               layer["w2"], layer["b2"],
                               layer["a_conv"], params["a_act"],
                               tile_n=tile_n, tile_e=tile_e)

    # FG_HGCL returns (node embeddings, edge embeddings of the original edges only)
    return n_feat[:num_nodes], e[:num_edges]


# ----------------------------------------------------------------------------
# Demo
# ----------------------------------------------------------------------------
if __name__ == "__main__":
    key = jax.random.PRNGKey(0)

    num_nodes = 24
    num_edges = 12
    in_dim = 16
    edge_dim = 128   # lane-dense (multiple of 128) per TPU layout guidance
    node_dim = 128
    nnz = 64         # number of (node, edge) incidences

    k_x, k_n, k_e, k_p = jax.random.split(key, 4)
    x = jax.random.normal(k_x, (num_nodes, in_dim), jnp.float32)
    src_nodes = jax.random.randint(k_n, (nnz,), 0, num_nodes, jnp.int32)
    src_edges = jax.random.randint(k_e, (nnz,), 0, num_edges, jnp.int32)
    hyperedge_index = jnp.stack([src_nodes, src_edges])  # (2, nnz)

    params = make_params(k_p, in_dim, edge_dim, node_dim, num_layers=2)

    n_emb, e_emb = fg_hgcl_forward(params, x, hyperedge_index, num_nodes, num_edges)
    jax.block_until_ready((n_emb, e_emb))

    assert n_emb.shape == (num_nodes, node_dim)
    assert e_emb.shape == (num_edges, edge_dim)
    print("KERNEL_OK")
</pallas_src>

<mosaic_0001>
module attributes {stable_mosaic.version = 11 : i64} {
  func.func private @main(%arg0: i32) attributes {dimension_semantics = [#tpu.dimension_semantics<core_parallel>], iteration_bounds = array<i64: 2>, tpu.core_type = #tpu.core_type<sc_scalar_subcore>, window_params = []} {
    return
  }
}

module attributes {stable_mosaic.version = 11 : i64} {
  func.func private @main(%arg0: i32) attributes {dimension_semantics = [#tpu.dimension_semantics<core_parallel>], iteration_bounds = array<i64: 2>, tpu.core_type = #tpu.core_type<sc_scalar_subcore>, window_params = []} {
    return
  }
}

module attributes {stable_mosaic.version = 11 : i64} {
  func.func @_lin_n2e_kernel(%arg0: i32, %arg1: memref<128x16xf32, #tpu.memory_space<vmem>>, %arg2: memref<16x128xf32, #tpu.memory_space<vmem>>, %arg3: memref<1x128xf32, #tpu.memory_space<vmem>>, %arg4: memref<128x128xf32, #tpu.memory_space<vmem>>) attributes {dimension_semantics = [#tpu.dimension_semantics<parallel>], iteration_bounds = array<i64: 1>, scalar_prefetch = 0 : i64, scratch_operands = 0 : i64, tpu.core_type = #tpu.core_type<tc>, window_params = [{transform_indices = @transform_0, window_bounds = array<i64: 128, 16>}, {pipeline_mode = #tpu.pipeline_mode<synchronous>, transform_indices = @transform_1, window_bounds = array<i64: 16, 128>}, {pipeline_mode = #tpu.pipeline_mode<synchronous>, transform_indices = @transform_2, window_bounds = array<i64: 1, 128>}, {transform_indices = @transform_3, window_bounds = array<i64: 128, 128>}]} {
    %c0 = arith.constant 0 : index
    %c0_0 = arith.constant 0 : index
    %0 = vector.load %arg1[%c0, %c0_0] : memref<128x16xf32, #tpu.memory_space<vmem>>, vector<128x16xf32>
    %c0_1 = arith.constant 0 : index
    %c0_2 = arith.constant 0 : index
    %1 = vector.load %arg2[%c0_1, %c0_2] : memref<16x128xf32, #tpu.memory_space<vmem>>, vector<16x128xf32>
    %cst = arith.constant dense<0.000000e+00> : vector<128x128xf32>
    %2 = tpu.matmul %0, %1, %cst {dimension_numbers = #tpu.dot_dimension_numbers<[1], [0], [0], [1], [0, 0, 1, 1], [], []>} : vector<128x16xf32>, vector<16x128xf32>, vector<128x128xf32> -> vector<128x128xf32>
    %c0_3 = arith.constant 0 : index
    %c0_4 = arith.constant 0 : index
    %3 = vector.load %arg3[%c0_3, %c0_4] : memref<1x128xf32, #tpu.memory_space<vmem>>, vector<1x128xf32>
    %4 = vector.broadcast %3 : vector<1x128xf32> to vector<128x128xf32>
    %5 = arith.addf %2, %4 : vector<128x128xf32>
    %c0_5 = arith.constant 0 : index
    %c0_6 = arith.constant 0 : index
    %6 = vector.load %arg4[%c0_5, %c0_6] : memref<128x128xf32, #tpu.memory_space<vmem>>, vector<128x128xf32>
    tpu.vector_store %arg4[%c0_5, %c0_6], %5 {strides = array<i32>} : memref<128x128xf32, #tpu.memory_space<vmem>>, vector<128x128xf32>,
    return
  }
  func.func @transform_0(%arg0: i32) -> (i32, i32) {
    %c0_i32 = arith.constant 0 : i32
    %c0_i32_0 = arith.constant 0 : i32
    return %arg0, %c0_i32 : i32, i32
  }
  func.func @transform_1(%arg0: i32) -> (i32, i32) {
    %c0_i32 = arith.constant 0 : i32
    %c0_i32_0 = arith.constant 0 : i32
    %c0_i32_1 = arith.constant 0 : i32
    return %c0_i32, %c0_i32_0 : i32, i32
  }
  func.func @transform_2(%arg0: i32) -> (i32, i32) {
    %c0_i32 = arith.constant 0 : i32
    %c0_i32_0 = arith.constant 0 : i32
    %c0_i32_1 = arith.constant 0 : i32
    return %c0_i32, %c0_i32_0 : i32, i32
  }
  func.func @transform_3(%arg0: i32) -> (i32, i32) {
    %c0_i32 = arith.constant 0 : i32
    %c0_i32_0 = arith.constant 0 : i32
    return %arg0, %c0_i32 : i32, i32
  }
}

module attributes {stable_mosaic.version = 11 : i64} {
  func.func @_e2n_agg_kernel(%arg0: i32, %arg1: i32, %arg2: memref<128x128xbf16, #tpu.memory_space<vmem>>, %arg3: memref<128x128xf32, #tpu.memory_space<vmem>>, %arg4: memref<128x128xf32, #tpu.memory_space<vmem>>, %arg5: memref<128x1xf32, #tpu.memory_space<vmem>>, %arg6: memref<128x128xf32, #tpu.memory_space<vmem>>, %arg7: memref<1x128xf32, #tpu.memory_space<vmem>>, %arg8: memref<1xf32, #tpu.memory_space<smem>>, %arg9: memref<1xf32, #tpu.memory_space<smem>>, %arg10: memref<128x128xf32, #tpu.memory_space<vmem>>, %arg11: memref<128x128xf32, #tpu.memory_space<vmem>>) attributes {dimension_semantics = [#tpu.dimension_semantics<parallel>, #tpu.dimension_semantics<arbitrary>], iteration_bounds = array<i64: 1, 1>, scalar_prefetch = 0 : i64, scratch_operands = 1 : i64, tpu.core_type = #tpu.core_type<tc>, window_params = [{transform_indices = @transform_0, window_bounds = array<i64: 128, 128>}, {transform_indices = @transform_1, window_bounds = array<i64: 128, 128>}, {transform_indices = @transform_2, window_bounds = array<i64: 128, 128>}, {transform_indices = @transform_3, window_bounds = array<i64: 128, 1>}, {pipeline_mode = #tpu.pipeline_mode<synchronous>, transform_indices = @transform_4, window_bounds = array<i64: 128, 128>}, {pipeline_mode = #tpu.pipeline_mode<synchronous>, transform_indices = @transform_5, window_bounds = array<i64: 1, 128>}, {transform_indices = @transform_6, window_bounds = array<i64: 1>}, {transform_indices = @transform_7, window_bounds = array<i64: 1>}, {transform_indices = @transform_8, window_bounds = array<i64: 128, 128>}]} {
    %c0_i32 = arith.constant 0 : i32
    %0 = arith.cmpi eq, %arg1, %c0_i32 : i32
    %1 = arith.extui %0 : i1 to i32
    %c0_i32_0 = arith.constant 0 : i32
    %2 = arith.cmpi ne, %1, %c0_i32_0 : i32
    scf.if %2 {
      %cst_10 = arith.constant 0.000000e+00 : f32
      %13 = vector.broadcast %cst_10 : f32 to vector<128x128xf32>
      %c0_11 = arith.constant 0 : index
      %c0_12 = arith.constant 0 : index
      %14 = vector.load %arg11[%c0_11, %c0_12] : memref<128x128xf32, #tpu.memory_space<vmem>>, vector<128x128xf32>
      tpu.vector_store %arg11[%c0_11, %c0_12], %13 {strides = array<i32>} : memref<128x128xf32, #tpu.memory_space<vmem>>, vector<128x128xf32>,
    } else {
    }
    %c0 = arith.constant 0 : index
    %c0_1 = arith.constant 0 : index
    %3 = vector.load %arg11[%c0, %c0_1] : memref<128x128xf32, #tpu.memory_space<vmem>>, vector<128x128xf32>
    %c0_2 = arith.constant 0 : index
    %c0_3 = arith.constant 0 : index
    %4 = vector.load %arg2[%c0_2, %c0_3] : memref<128x128xbf16, #tpu.memory_space<vmem>>, vector<128x128xbf16>
    %5 = arith.extf %4 : vector<128x128xbf16> to vector<128x128xf32>
    %c0_4 = arith.constant 0 : index
    %c0_5 = arith.constant 0 : index
    %6 = vector.load %arg3[%c0_4, %c0_5] : memref<128x128xf32, #tpu.memory_space<vmem>>, vector<128x128xf32>
    %cst = arith.constant dense<0.000000e+00> : vector<128x128xf32>
    %7 = tpu.matmul %5, %6, %cst {dimension_numbers = #tpu.dot_dimension_numbers<[1], [0], [0], [1], [0, 0, 1, 1], [], []>} : vector<128x128xf32>, vector<128x128xf32>, vector<128x128xf32> -> vector<128x128xf32>
    %8 = arith.addf %3, %7 : vector<128x128xf32>
    %c0_6 = arith.constant 0 : index
    %c0_7 = arith.constant 0 : index
    %9 = vector.load %arg11[%c0_6, %c0_7] : memref<128x128xf32, #tpu.memory_space<vmem>>, vector<128x128xf32>
    tpu.vector_store %arg11[%c0_6, %c0_7], %8 {strides = array<i32>} : memref<128x128xf32, #tpu.memory_space<vmem>>, vector<128x128xf32>,
    %c0_i32_8 = arith.constant 0 : i32
    %10 = arith.cmpi eq, %arg1, %c0_i32_8 : i32
    %11 = arith.extui %10 : i1 to i32
    %c0_i32_9 = arith.constant 0 : i32
    %12 = arith.cmpi ne, %11, %c0_i32_9 : i32
    scf.if %12 {
      %c0_10 = arith.constant 0 : index
      %13 = memref.load %arg8[%c0_10] : memref<1xf32, #tpu.memory_space<smem>>
      %c0_11 = arith.constant 0 : index
      %c0_12 = arith.constant 0 : index
      %14 = vector.load %arg4[%c0_11, %c0_12] : memref<128x128xf32, #tpu.memory_space<vmem>>, vector<128x128xf32>
      %cst_13 = arith.constant 0.000000e+00 : f32
      %15 = vector.broadcast %cst_13 : f32 to vector<128x128xf32>
      %16 = arith.cmpf oge, %14, %15 : vector<128x128xf32>
      %17 = vector.broadcast %13 : f32 to vector<128x128xf32>
      %18 = arith.mulf %17, %14 : vector<128x128xf32>
      %19 = arith.select %16, %14, %18 : vector<128x128xi1>, vector<128x128xf32>
      %c0_14 = arith.constant 0 : index
      %c0_15 = arith.constant 0 : index
      %20 = vector.load %arg11[%c0_14, %c0_15] : memref<128x128xf32, #tpu.memory_space<vmem>>, vector<128x128xf32>
      %21 = arith.addf %20, %19 : vector<128x128xf32>
      %c0_16 = arith.constant 0 : index
      %c0_17 = arith.constant 0 : index
      %22 = vector.load %arg5[%c0_16, %c0_17] : memref<128x1xf32, #tpu.memory_space<vmem>>, vector<128x1xf32>
      %23 = vector.broadcast %22 : vector<128x1xf32> to vector<128x128xf32>
      %24 = arith.mulf %21, %23 : vector<128x128xf32>
      %c0_18 = arith.constant 0 : index
      %c0_19 = arith.constant 0 : index
      %25 = vector.load %arg6[%c0_18, %c0_19] : memref<128x128xf32, #tpu.memory_space<vmem>>, vector<128x128xf32>
      %cst_20 = arith.constant dense<0.000000e+00> : vector<128x128xf32>
      %26 = tpu.matmul %24, %25, %cst_20 {dimension_numbers = #tpu.dot_dimension_numbers<[1], [0], [0], [1], [0, 0, 1, 1], [], []>} : vector<128x128xf32>, vector<128x128xf32>, vector<128x128xf32> -> vector<128x128xf32>
      %c0_21 = arith.constant 0 : index
      %c0_22 = arith.constant 0 : index
      %27 = vector.load %arg7[%c0_21, %c0_22] : memref<1x128xf32, #tpu.memory_space<vmem>>, vector<1x128xf32>
      %28 = vector.broadcast %27 : vector<1x128xf32> to vector<128x128xf32>
      %29 = arith.addf %26, %28 : vector<128x128xf32>
      %c0_23 = arith.constant 0 : index
      %30 = memref.load %arg9[%c0_23] : memref<1xf32, #tpu.memory_space<smem>>
      %cst_24 = arith.constant 0.000000e+00 : f32
      %31 = vector.broadcast %cst_24 : f32 to vector<128x128xf32>
      %32 = arith.cmpf oge, %29, %31 : vector<128x128xf32>
      %33 = vector.broadcast %30 : f32 to vector<128x128xf32>
      %34 = arith.mulf %33, %29 : vector<128x128xf32>
      %35 = arith.select %32, %29, %34 : vector<128x128xi1>, vector<128x128xf32>
      %c0_25 = arith.constant 0 : index
      %c0_26 = arith.constant 0 : index
      %36 = vector.load %arg10[%c0_25, %c0_26] : memref<128x128xf32, #tpu.memory_space<vmem>>, vector<128x128xf32>
      tpu.vector_store %arg10[%c0_25, %c0_26], %35 {strides = array<i32>} : memref<128x128xf32, #tpu.memory_space<vmem>>, vector<128x128xf32>,
    } else {
    }
    return
  }
  func.func @transform_0(%arg0: i32, %arg1: i32) -> (i32, i32) {
    %c0_i32 = arith.constant 0 : i32
    return %arg0, %arg1 : i32, i32
  }
  func.func @transform_1(%arg0: i32, %arg1: i32) -> (i32, i32) {
    %c0_i32 = arith.constant 0 : i32
    %c0_i32_0 = arith.constant 0 : i32
    return %arg1, %c0_i32 : i32, i32
  }
  func.func @transform_2(%arg0: i32, %arg1: i32) -> (i32, i32) {
    %c0_i32 = arith.constant 0 : i32
    %c0_i32_0 = arith.constant 0 : i32
    return %arg0, %c0_i32 : i32, i32
  }
  func.func @transform_3(%arg0: i32, %arg1: i32) -> (i32, i32) {
    %c0_i32 = arith.constant 0 : i32
    %c0_i32_0 = arith.constant 0 : i32
    return %arg0, %c0_i32 : i32, i32
  }
  func.func @transform_4(%arg0: i32, %arg1: i32) -> (i32, i32) {
    %c0_i32 = arith.constant 0 : i32
    %c0_i32_0 = arith.constant 0 : i32
    %c0_i32_1 = arith.constant 0 : i32
    return %c0_i32, %c0_i32_0 : i32, i32
  }
  func.func @transform_5(%arg0: i32, %arg1: i32) -> (i32, i32) {
    %c0_i32 = arith.constant 0 : i32
    %c0_i32_0 = arith.constant 0 : i32
    %c0_i32_1 = arith.constant 0 : i32
    return %c0_i32, %c0_i32_0 : i32, i32
  }
  func.func @transform_6(%arg0: i32, %arg1: i32) -> i32 {
    %c0_i32 = arith.constant 0 : i32
    %c0_i32_0 = arith.constant 0 : i32
    return %c0_i32 : i32
  }
  func.func @transform_7(%arg0: i32, %arg1: i32) -> i32 {
    %c0_i32 = arith.constant 0 : i32
    %c0_i32_0 = arith.constant 0 : i32
    return %c0_i32 : i32
  }
  func.func @transform_8(%arg0: i32, %arg1: i32) -> (i32, i32) {
    %c0_i32 = arith.constant 0 : i32
    %c0_i32_0 = arith.constant 0 : i32
    return %arg0, %c0_i32 : i32, i32
  }
}

module attributes {stable_mosaic.version = 11 : i64} {
  func.func @_n2e_agg_kernel(%arg0: i32, %arg1: i32, %arg2: memref<128x128xbf16, #tpu.memory_space<vmem>>, %arg3: memref<128x128xf32, #tpu.memory_space<vmem>>, %arg4: memref<128x1xf32, #tpu.memory_space<vmem>>, %arg5: memref<1xf32, #tpu.memory_space<smem>>, %arg6: memref<128x128xf32, #tpu.memory_space<vmem>>, %arg7: memref<128x128xf32, #tpu.memory_space<vmem>>) attributes {dimension_semantics = [#tpu.dimension_semantics<parallel>, #tpu.dimension_semantics<arbitrary>], iteration_bounds = array<i64: 1, 1>, scalar_prefetch = 0 : i64, scratch_operands = 1 : i64, tpu.core_type = #tpu.core_type<tc>, window_params = [{transform_indices = @transform_0, window_bounds = array<i64: 128, 128>}, {transform_indices = @transform_1, window_bounds = array<i64: 128, 128>}, {transform_indices = @transform_2, window_bounds = array<i64: 128, 1>}, {transform_indices = @transform_3, window_bounds = array<i64: 1>}, {transform_indices = @transform_4, window_bounds = array<i64: 128, 128>}]} {
    %c0_i32 = arith.constant 0 : i32
    %0 = arith.cmpi eq, %arg1, %c0_i32 : i32
    %1 = arith.extui %0 : i1 to i32
    %c0_i32_0 = arith.constant 0 : i32
    %2 = arith.cmpi ne, %1, %c0_i32_0 : i32
    scf.if %2 {
      %cst_10 = arith.constant 0.000000e+00 : f32
      %13 = vector.broadcast %cst_10 : f32 to vector<128x128xf32>
      %c0_11 = arith.constant 0 : index
      %c0_12 = arith.constant 0 : index
      %14 = vector.load %arg7[%c0_11, %c0_12] : memref<128x128xf32, #tpu.memory_space<vmem>>, vector<128x128xf32>
      tpu.vector_store %arg7[%c0_11, %c0_12], %13 {strides = array<i32>} : memref<128x128xf32, #tpu.memory_space<vmem>>, vector<128x128xf32>,
    } else {
    }
    %c0 = arith.constant 0 : index
    %c0_1 = arith.constant 0 : index
    %3 = vector.load %arg7[%c0, %c0_1] : memref<128x128xf32, #tpu.memory_space<vmem>>, vector<128x128xf32>
    %c0_2 = arith.constant 0 : index
    %c0_3 = arith.constant 0 : index
    %4 = vector.load %arg2[%c0_2, %c0_3] : memref<128x128xbf16, #tpu.memory_space<vmem>>, vector<128x128xbf16>
    %5 = arith.extf %4 : vector<128x128xbf16> to vector<128x128xf32>
    %c0_4 = arith.constant 0 : index
    %c0_5 = arith.constant 0 : index
    %6 = vector.load %arg3[%c0_4, %c0_5] : memref<128x128xf32, #tpu.memory_space<vmem>>, vector<128x128xf32>
    %cst = arith.constant dense<0.000000e+00> : vector<128x128xf32>
    %7 = tpu.matmul %5, %6, %cst {dimension_numbers = #tpu.dot_dimension_numbers<[0], [0], [1], [1], [0, 1, 1, 1], [], []>} : vector<128x128xf32>, vector<128x128xf32>, vector<128x128xf32> -> vector<128x128xf32>
    %8 = arith.addf %3, %7 : vector<128x128xf32>
    %c0_6 = arith.constant 0 : index
    %c0_7 = arith.constant 0 : index
    %9 = vector.load %arg7[%c0_6, %c0_7] : memref<128x128xf32, #tpu.memory_space<vmem>>, vector<128x128xf32>
    tpu.vector_store %arg7[%c0_6, %c0_7], %8 {strides = array<i32>} : memref<128x128xf32, #tpu.memory_space<vmem>>, vector<128x128xf32>,
    %c0_i32_8 = arith.constant 0 : i32
    %10 = arith.cmpi eq, %arg1, %c0_i32_8 : i32
    %11 = arith.extui %10 : i1 to i32
    %c0_i32_9 = arith.constant 0 : i32
    %12 = arith.cmpi ne, %11, %c0_i32_9 : i32
    scf.if %12 {
      %c0_10 = arith.constant 0 : index
      %13 = memref.load %arg5[%c0_10] : memref<1xf32, #tpu.memory_space<smem>>
      %c0_11 = arith.constant 0 : index
      %c0_12 = arith.constant 0 : index
      %14 = vector.load %arg7[%c0_11, %c0_12] : memref<128x128xf32, #tpu.memory_space<vmem>>, vector<128x128xf32>
      %c0_13 = arith.constant 0 : index
      %c0_14 = arith.constant 0 : index
      %15 = vector.load %arg4[%c0_13, %c0_14] : memref<128x1xf32, #tpu.memory_space<vmem>>, vector<128x1xf32>
      %16 = vector.broadcast %15 : vector<128x1xf32> to vector<128x128xf32>
      %17 = arith.mulf %14, %16 : vector<128x128xf32>
      %cst_15 = arith.constant 0.000000e+00 : f32
      %18 = vector.broadcast %cst_15 : f32 to vector<128x128xf32>
      %19 = arith.cmpf oge, %17, %18 : vector<128x128xf32>
      %20 = vector.broadcast %13 : f32 to vector<128x128xf32>
      %21 = arith.mulf %20, %17 : vector<128x128xf32>
      %22 = arith.select %19, %17, %21 : vector<128x128xi1>, vector<128x128xf32>
      %c0_16 = arith.constant 0 : index
      %c0_17 = arith.constant 0 : index
      %23 = vector.load %arg6[%c0_16, %c0_17] : memref<128x128xf32, #tpu.memory_space<vmem>>, vector<128x128xf32>
      tpu.vector_store %arg6[%c0_16, %c0_17], %22 {strides = array<i32>} : memref<128x128xf32, #tpu.memory_space<vmem>>, vector<128x128xf32>,
    } else {
    }
    return
  }
  func.func @transform_0(%arg0: i32, %arg1: i32) -> (i32, i32) {
    %c0_i32 = arith.constant 0 : i32
    return %arg1, %arg0 : i32, i32
  }
  func.func @transform_1(%arg0: i32, %arg1: i32) -> (i32, i32) {
    %c0_i32 = arith.constant 0 : i32
    %c0_i32_0 = arith.constant 0 : i32
    return %arg1, %c0_i32 : i32, i32
  }
  func.func @transform_2(%arg0: i32, %arg1: i32) -> (i32, i32) {
    %c0_i32 = arith.constant 0 : i32
    %c0_i32_0 = arith.constant 0 : i32
    return %arg0, %c0_i32 : i32, i32
  }
  func.func @transform_3(%arg0: i32, %arg1: i32) -> i32 {
    %c0_i32 = arith.constant 0 : i32
    %c0_i32_0 = arith.constant 0 : i32
    return %c0_i32 : i32
  }
  func.func @transform_4(%arg0: i32, %arg1: i32) -> (i32, i32) {
    %c0_i32 = arith.constant 0 : i32
    %c0_i32_0 = arith.constant 0 : i32
    return %arg0, %c0_i32 : i32, i32
  }
}

module attributes {stable_mosaic.version = 11 : i64} {
  func.func @_lin_n2e_kernel(%arg0: i32, %arg1: memref<128x128xf32, #tpu.memory_space<vmem>>, %arg2: memref<128x128xf32, #tpu.memory_space<vmem>>, %arg3: memref<1x128xf32, #tpu.memory_space<vmem>>, %arg4: memref<128x128xf32, #tpu.memory_space<vmem>>) attributes {dimension_semantics = [#tpu.dimension_semantics<parallel>], iteration_bounds = array<i64: 1>, scalar_prefetch = 0 : i64, scratch_operands = 0 : i64, tpu.core_type = #tpu.core_type<tc>, window_params = [{transform_indices = @transform_0, window_bounds = array<i64: 128, 128>}, {pipeline_mode = #tpu.pipeline_mode<synchronous>, transform_indices = @transform_1, window_bounds = array<i64: 128, 128>}, {pipeline_mode = #tpu.pipeline_mode<synchronous>, transform_indices = @transform_2, window_bounds = array<i64: 1, 128>}, {transform_indices = @transform_3, window_bounds = array<i64: 128, 128>}]} {
    %c0 = arith.constant 0 : index
    %c0_0 = arith.constant 0 : index
    %0 = vector.load %arg1[%c0, %c0_0] : memref<128x128xf32, #tpu.memory_space<vmem>>, vector<128x128xf32>
    %c0_1 = arith.constant 0 : index
    %c0_2 = arith.constant 0 : index
    %1 = vector.load %arg2[%c0_1, %c0_2] : memref<128x128xf32, #tpu.memory_space<vmem>>, vector<128x128xf32>
    %cst = arith.constant dense<0.000000e+00> : vector<128x128xf32>
    %2 = tpu.matmul %0, %1, %cst {dimension_numbers = #tpu.dot_dimension_numbers<[1], [0], [0], [1], [0, 0, 1, 1], [], []>} : vector<128x128xf32>, vector<128x128xf32>, vector<128x128xf32> -> vector<128x128xf32>
    %c0_3 = arith.constant 0 : index
    %c0_4 = arith.constant 0 : index
    %3 = vector.load %arg3[%c0_3, %c0_4] : memref<1x128xf32, #tpu.memory_space<vmem>>, vector<1x128xf32>
    %4 = vector.broadcast %3 : vector<1x128xf32> to vector<128x128xf32>
    %5 = arith.addf %2, %4 : vector<128x128xf32>
    %c0_5 = arith.constant 0 : index
    %c0_6 = arith.constant 0 : index
    %6 = vector.load %arg4[%c0_5, %c0_6] : memref<128x128xf32, #tpu.memory_space<vmem>>, vector<128x128xf32>
    tpu.vector_store %arg4[%c0_5, %c0_6], %5 {strides = array<i32>} : memref<128x128xf32, #tpu.memory_space<vmem>>, vector<128x128xf32>,
    return
  }
  func.func @transform_0(%arg0: i32) -> (i32, i32) {
    %c0_i32 = arith.constant 0 : i32
    %c0_i32_0 = arith.constant 0 : i32
    return %arg0, %c0_i32 : i32, i32
  }
  func.func @transform_1(%arg0: i32) -> (i32, i32) {
    %c0_i32 = arith.constant 0 : i32
    %c0_i32_0 = arith.constant 0 : i32
    %c0_i32_1 = arith.constant 0 : i32
    return %c0_i32, %c0_i32_0 : i32, i32
  }
  func.func @transform_2(%arg0: i32) -> (i32, i32) {
    %c0_i32 = arith.constant 0 : i32
    %c0_i32_0 = arith.constant 0 : i32
    %c0_i32_1 = arith.constant 0 : i32
    return %c0_i32, %c0_i32_0 : i32, i32
  }
  func.func @transform_3(%arg0: i32) -> (i32, i32) {
    %c0_i32 = arith.constant 0 : i32
    %c0_i32_0 = arith.constant 0 : i32
    return %arg0, %c0_i32 : i32, i32
  }
}

</mosaic_0001>

<llo_original>
// kernel: fg_hgcl_forward.6
$region0: #{fg_hgcl_forward.6}
  #allocation0 [shape = 'u32[]', space=smem, size = 0x4, offset = 0x4, fixed_abs, tag = 'smem constant byte address 0x4 - core index']
  #allocation1 [shape = 'u32[144,128]{1,0:T(1,128)}', space=vmem, size = 0x12000, scoped, tag = 'internal scratch']
  %s0 = inlined_call_operand.vmem [shape: f32[128,16], index: 0, kind: input, shape index: {}]
  %s1 = inlined_call_operand.vmem [shape: f32[16,128], index: 1, kind: input, shape index: {}]
  %s2 = inlined_call_operand.vmem [shape: f32[1,128], index: 2, kind: input, shape index: {}]
  %s3 = inlined_call_operand.vmem [shape: f32[128,128], index: 3, kind: output, shape index: {}]
  %s4 = sld [smem:[#allocation0]]
  $region22: #{fg_hgcl_forward.6} parent=0
    _
  %s6 = ssub.s32 1, %s4
  %s7 = scalar_select 0, %s6, %s4
  // Predicated region
  $region2: #{fg_hgcl_forward.6} parent=0 // pred_check
    _
  $region3: #{fg_hgcl_forward.6} parent=0 // pred_check_branch
    %9 = sbr.rel (0) target = $region5
  $region4: #{fg_hgcl_forward.6} parent=0 // pred_region
    _
  $region5: #{fg_hgcl_forward.6} parent=0 // pred_fallthru
    _
  // Predicated region
  $region6: #{fg_hgcl_forward.6} parent=0 // pred_check
    _
  $region7: #{fg_hgcl_forward.6} parent=0 // pred_check_branch
    %11 = sbr.rel (0) target = $region9
  $region8: #{fg_hgcl_forward.6} parent=0 // pred_region
    _
  $region9: #{fg_hgcl_forward.6} parent=0 // pred_fallthru
    _
  // Predicated region
  $region10: #{fg_hgcl_forward.6} parent=0 // pred_check
    _
  $region11: #{fg_hgcl_forward.6} parent=0 // pred_check_branch
    %13 = sbr.rel (0) target = $region13
  $region12: #{fg_hgcl_forward.6} parent=0 // pred_region
    _
  $region13: #{fg_hgcl_forward.6} parent=0 // pred_fallthru
    _
  %v14 = vld [vmem:[%s0] sm:$0xff]
  %v15 = vld [vmem:[%s0 + $0x8] sm:$0xff]
  %v16 = vld [vmem:[%s0 + $0x10] sm:$0xff]
  %v17 = vld [vmem:[%s0 + $0x18] sm:$0xff]
  %v18 = vld [vmem:[%s0 + $0x20] sm:$0xff]
  %v19 = vld [vmem:[%s0 + $0x28] sm:$0xff]
  %v20 = vld [vmem:[%s0 + $0x30] sm:$0xff]
  %v21 = vld [vmem:[%s0 + $0x38] sm:$0xff]
  %v22 = vld [vmem:[%s0 + $0x40] sm:$0xff]
  %v23 = vld [vmem:[%s0 + $0x48] sm:$0xff]
  %v24 = vld [vmem:[%s0 + $0x50] sm:$0xff]
  %v25 = vld [vmem:[%s0 + $0x58] sm:$0xff]
  %v26 = vld [vmem:[%s0 + $0x60] sm:$0xff]
  %v27 = vld [vmem:[%s0 + $0x68] sm:$0xff]
  %v28 = vld [vmem:[%s0 + $0x70] sm:$0xff]
  %v29 = vld [vmem:[%s0 + $0x78] sm:$0xff]
  %v30 = vld [vmem:[%s1] sm:$0xff]
  %v31 = vld [vmem:[%s1 + $0x8] sm:$0xff]
  %v32 = vld [vmem:[%s2] sm:$0x1]
  %v34 = vlaneseq
  %v35 = vshrl.u32 %v34, 7
  %v36 = vsub.s32 0, %v35
  %v37 = vrot.slane %v32, %v36
  %vm39 = vcmask 130048
  %v41 = vsel %vm39, %v14, 0
  %v44 = vsel %vm39, %v15, 0
  %v47 = vsel %vm39, %v16, 0
  %v50 = vsel %vm39, %v17, 0
  %v53 = vsel %vm39, %v18, 0
  %v56 = vsel %vm39, %v19, 0
  %v59 = vsel %vm39, %v20, 0
  %v62 = vsel %vm39, %v21, 0
  %v65 = vsel %vm39, %v22, 0
  %v68 = vsel %vm39, %v23, 0
  %v71 = vsel %vm39, %v24, 0
  %v74 = vsel %vm39, %v25, 0
  %v77 = vsel %vm39, %v26, 0
  %v80 = vsel %vm39, %v27, 0
  %v83 = vsel %vm39, %v28, 0
  %v86 = vsel %vm39, %v29, 0
  %88 = vmatprep.subr.mxu0 0.0
  %89 = vmatpush1.msra.mxu0 0.0
  %90 = vmatprep.subr.mxu0 0.0
  %91 = vmatpush1.msra.mxu0 0.0
  %92 = vmatprep.subr.mxu0 0.0
  %93 = vmatpush1.msra.mxu0 0.0
  %94 = vmatprep.subr.mxu0 0.0
  %95 = vmatpush1.msra.mxu0 0.0
  %96 = vmatprep.subr.mxu0 0.0
  %97 = vmatpush1.msra.mxu0 0.0
  %98 = vmatprep.subr.mxu0 0.0
  %99 = vmatpush1.msra.mxu0 0.0
  %100 = vmatprep.subr.mxu0 0.0
  %101 = vmatpush1.msra.mxu0 0.0
  %102 = vmatprep.subr.mxu0 0.0
  %103 = vmatpush1.msra.mxu0 0.0
  %104 = vmatprep.subr.mxu0 0.0
  %105 = vmatpush1.msra.mxu0 0.0
  %106 = vmatprep.subr.mxu0 0.0
  %107 = vmatpush1.msra.mxu0 0.0
  %108 = vmatprep.subr.mxu0 0.0
  %109 = vmatpush1.msra.mxu0 0.0
  %110 = vmatprep.subr.mxu0 0.0
  %111 = vmatpush1.msra.mxu0 0.0
  %112 = vmatprep.subr.mxu0 0.0
  %113 = vmatpush1.msra.mxu0 0.0
  %114 = vmatprep.subr.mxu0 0.0
  %115 = vmatpush1.msra.mxu0 0.0
  %116 = vmatprep.subr.mxu0 0.0
  %117 = vmatpush1.msra.mxu0 %v31
  %118 = vmatprep.subr.mxu0 0.0
  %119 = vmatpush1.msra.mxu0 %v30
  %120 = vmatprep.subr.mxu0 0.0
  %121 = vmatpush2.msra.mxu0 0.0
  %122 = vmatprep.subr.mxu0 0.0
  %123 = vmatpush2.msra.mxu0 0.0
  %124 = vmatprep.subr.mxu0 0.0
  %125 = vmatpush2.msra.mxu0 0.0
  %126 = vmatprep.subr.mxu0 0.0
  %127 = vmatpush2.msra.mxu0 0.0
  %128 = vmatprep.subr.mxu0 0.0
  %129 = vmatpush2.msra.mxu0 0.0
  %130 = vmatprep.subr.mxu0 0.0
  %131 = vmatpush2.msra.mxu0 0.0
  %132 = vmatprep.subr.mxu0 0.0
  %133 = vmatpush2.msra.mxu0 0.0
  %134 = vmatprep.subr.mxu0 0.0
  %135 = vmatpush2.msra.mxu0 0.0
  %136 = vmatprep.subr.mxu0 0.0
  %137 = vmatpush2.msra.mxu0 0.0
  %138 = vmatprep.subr.mxu0 0.0
  %139 = vmatpush2.msra.mxu0 0.0
  %140 = vmatprep.subr.mxu0 0.0
  %141 = vmatpush2.msra.mxu0 0.0
  %142 = vmatprep.subr.mxu0 0.0
  %143 = vmatpush2.msra.mxu0 0.0
  %144 = vmatprep.subr.mxu0 0.0
  %145 = vmatpush2.msra.mxu0 0.0
  %146 = vmatprep.subr.mxu0 0.0
  %147 = vmatpush2.msra.mxu0 0.0
  %148 = vmatprep.subr.mxu0 0.0
  %149 = vmatpush2.msra.mxu0 0.0
  %150 = vmatprep.subr.mxu0 0.0
  %151 = vmatpush2.msra.mxu0 0.0
  %152 = vmatprep.mubr.f32.mxu0 0.0
  %153 = vmatmul.mubr.f32.gmra.mxu0 %v41
  %v154 = vpop.f32.mrf.mxu0
  %v155 = vadd.f32 %v37, %v154
  %v156 = vpop.f32.mrf.mxu0
  %157 = vmatprep.mubr.f32.mxu0 0.0
  %158 = vmatmul.mubr.f32.gmra.mxu0 %v44
  %v159 = vpop.f32.mrf.mxu0
  %v160 = vadd.f32 %v37, %v159
  %v161 = vpop.f32.mrf.mxu0
  %162 = vmatprep.mubr.f32.mxu0 0.0
  %163 = vmatmul.mubr.f32.gmra.mxu0 %v47
  %v164 = vpop.f32.mrf.mxu0
  %v165 = vadd.f32 %v37, %v164
  %v166 = vpop.f32.mrf.mxu0
  %167 = vmatprep.mubr.f32.mxu0 0.0
  %168 = vmatmul.mubr.f32.gmra.mxu0 %v50
  %v169 = vpop.f32.mrf.mxu0
  %v170 = vadd.f32 %v37, %v169
  %v171 = vpop.f32.mrf.mxu0
  %172 = vmatprep.mubr.f32.mxu0 0.0
  %173 = vmatmul.mubr.f32.gmra.mxu0 %v53
  %v174 = vpop.f32.mrf.mxu0
  %v175 = vadd.f32 %v37, %v174
  %v176 = vpop.f32.mrf.mxu0
  %177 = vmatprep.mubr.f32.mxu0 0.0
  %178 = vmatmul.mubr.f32.gmra.mxu0 %v56
  %v179 = vpop.f32.mrf.mxu0
  %v180 = vadd.f32 %v37, %v179
  %v181 = vpop.f32.mrf.mxu0
  %182 = vmatprep.mubr.f32.mxu0 0.0
  %183 = vmatmul.mubr.f32.gmra.mxu0 %v59
  %v184 = vpop.f32.mrf.mxu0
  %v185 = vadd.f32 %v37, %v184
  %v186 = vpop.f32.mrf.mxu0
  %187 = vmatprep.mubr.f32.mxu0 0.0
  %188 = vmatmul.mubr.f32.gmra.mxu0 %v62
  %v189 = vpop.f32.mrf.mxu0
  %v190 = vadd.f32 %v37, %v189
  %v191 = vpop.f32.mrf.mxu0
  %192 = vmatprep.mubr.f32.mxu0 0.0
  %193 = vmatmul.mubr.f32.gmra.mxu0 %v65
  %v194 = vpop.f32.mrf.mxu0
  %v195 = vadd.f32 %v37, %v194
  %v196 = vpop.f32.mrf.mxu0
  %197 = vmatprep.mubr.f32.mxu0 0.0
  %198 = vmatmul.mubr.f32.gmra.mxu0 %v68
  %v199 = vpop.f32.mrf.mxu0
  %v200 = vadd.f32 %v37, %v199
  %v201 = vpop.f32.mrf.mxu0
  %202 = vmatprep.mubr.f32.mxu0 0.0
  %203 = vmatmul.mubr.f32.gmra.mxu0 %v71
  %v204 = vpop.f32.mrf.mxu0
  %v205 = vadd.f32 %v37, %v204
  %v206 = vpop.f32.mrf.mxu0
  %207 = vmatprep.mubr.f32.mxu0 0.0
  %208 = vmatmul.mubr.f32.gmra.mxu0 %v74
  %v209 = vpop.f32.mrf.mxu0
  %v210 = vadd.f32 %v37, %v209
  %v211 = vpop.f32.mrf.mxu0
  %212 = vmatprep.mubr.f32.mxu0 0.0
  %213 = vmatmul.mubr.f32.gmra.mxu0 %v77
  %v214 = vpop.f32.mrf.mxu0
  %v215 = vadd.f32 %v37, %v214
  %v216 = vpop.f32.mrf.mxu0
  %217 = vmatprep.mubr.f32.mxu0 0.0
  %218 = vmatmul.mubr.f32.gmra.mxu0 %v80
  %v219 = vpop.f32.mrf.mxu0
  %v220 = vadd.f32 %v37, %v219
  %v221 = vpop.f32.mrf.mxu0
  %222 = vmatprep.mubr.f32.mxu0 0.0
  %223 = vmatmul.mubr.f32.gmra.mxu0 %v83
  %v224 = vpop.f32.mrf.mxu0
  %v225 = vadd.f32 %v37, %v224
  %v226 = vpop.f32.mrf.mxu0
  %227 = vmatprep.mubr.f32.mxu0 0.0
  %228 = vmatmul.mubr.f32.gmra.mxu0 %v86
  %v229 = vpop.f32.mrf.mxu0
  %v230 = vadd.f32 %v37, %v229
  %v231 = vpop.f32.mrf.mxu0
  %232 = vdwg.mxu0
  %233 = vst [vmem:[%s3] sm:$0xff] %v155
  %234 = vst [vmem:[%s3 + $0x8] sm:$0xff] %v160
  %235 = vst [vmem:[%s3 + $0x10] sm:$0xff] %v165
  %236 = vst [vmem:[%s3 + $0x18] sm:$0xff] %v170
  %237 = vst [vmem:[%s3 + $0x20] sm:$0xff] %v175
  %238 = vst [vmem:[%s3 + $0x28] sm:$0xff] %v180
  %239 = vst [vmem:[%s3 + $0x30] sm:$0xff] %v185
  %240 = vst [vmem:[%s3 + $0x38] sm:$0xff] %v190
  %241 = vst [vmem:[%s3 + $0x40] sm:$0xff] %v195
  %242 = vst [vmem:[%s3 + $0x48] sm:$0xff] %v200
  %243 = vst [vmem:[%s3 + $0x50] sm:$0xff] %v205
  %244 = vst [vmem:[%s3 + $0x58] sm:$0xff] %v210
  %245 = vst [vmem:[%s3 + $0x60] sm:$0xff] %v215
  %246 = vst [vmem:[%s3 + $0x68] sm:$0xff] %v220
  %247 = vst [vmem:[%s3 + $0x70] sm:$0xff] %v225
  %248 = vst [vmem:[%s3 + $0x78] sm:$0xff] %v230
  // Predicated region
  $region14: #{fg_hgcl_forward.6} parent=0 // pred_check
    _
  $region15: #{fg_hgcl_forward.6} parent=0 // pred_check_branch
    %250 = sbr.rel (0) target = $region17
  $region16: #{fg_hgcl_forward.6} parent=0 // pred_region
    _
  $region17: #{fg_hgcl_forward.6} parent=0 // pred_fallthru
    _
  // Predicated region
  $region18: #{fg_hgcl_forward.6} parent=0 // pred_check
    _
  $region19: #{fg_hgcl_forward.6} parent=0 // pred_check_branch
    %252 = sbr.rel (0) target = $region21
  $region20: #{fg_hgcl_forward.6} parent=0 // pred_region
    _
  $region21: #{fg_hgcl_forward.6} parent=0 // pred_fallthru
    _

// kernel: fg_hgcl_forward.8
$region0: #{fg_hgcl_forward.8}
  #allocation0 [shape = 'u32[]', space=smem, size = 0x4, offset = 0x4, fixed_abs, tag = 'smem constant byte address 0x4 - core index']
  #allocation1 [shape = 'u32[144,128]{1,0:T(1,128)}', space=vmem, size = 0x12000, scoped, tag = 'internal scratch']
  #allocation2 [shape = 'f32[128,128]{1,0:T(8,128)}', space=vmem, size = 0x10000, scoped, tag = 'scratch operand']
  #allocation3 [shape = 'f32[1]{0:T(128)S(6)}', space=smem, size = 0x200, scoped, tag = 'scoped memory for fg_hgcl_forward.8']
  #allocation4 [shape = 'f32[1]{0:T(128)S(6)}', space=smem, size = 0x200, scoped, tag = 'scoped memory for fg_hgcl_forward.8']
  %s0 = inlined_call_operand.vmem [shape: bf16[128,128], index: 0, kind: input, shape index: {}]
  %s1 = inlined_call_operand.vmem [shape: f32[128,128], index: 1, kind: input, shape index: {}]
  %s2 = inlined_call_operand.vmem [shape: f32[128,128], index: 2, kind: input, shape index: {}]
  %s3 = inlined_call_operand.vmem [shape: f32[128,1], index: 3, kind: input, shape index: {}]
  %s4 = inlined_call_operand.vmem [shape: f32[128,128], index: 4, kind: input, shape index: {}]
  %s5 = inlined_call_operand.vmem [shape: f32[1,128], index: 5, kind: input, shape index: {}]
  %s6 = inlined_call_operand.<no memory space> [shape: f32[1], index: 6, kind: input, shape index: {}]
  %s7 = inlined_call_operand.<no memory space> [shape: f32[1], index: 7, kind: input, shape index: {}]
  %s8 = inlined_call_operand.vmem [shape: f32[128,128], index: 8, kind: output, shape index: {}]
  %s9 = sld [smem:[#allocation0]]
  $region50: #{fg_hgcl_forward.8} parent=0
    _
  %s11 = ssub.s32 1, %s9
  %s12 = scalar_select 0, %s11, %s9
  %13 = sst [smem:[#allocation3]] %s6
  %14 = sst [smem:[#allocation4]] %s7
  // Predicated region
  $region2: #{fg_hgcl_forward.8} parent=0 // pred_check
    _
  $region3: #{fg_hgcl_forward.8} parent=0 // pred_check_branch
    %16 = sbr.rel (0) target = $region5
  $region4: #{fg_hgcl_forward.8} parent=0 // pred_region
    _
  $region5: #{fg_hgcl_forward.8} parent=0 // pred_fallthru
    _
  // Predicated region
  $region6: #{fg_hgcl_forward.8} parent=0 // pred_check
    _
  $region7: #{fg_hgcl_forward.8} parent=0 // pred_check_branch
    %18 = sbr.rel (0) target = $region9
  $region8: #{fg_hgcl_forward.8} parent=0 // pred_region
    _
  $region9: #{fg_hgcl_forward.8} parent=0 // pred_fallthru
    _
  // Predicated region
  $region10: #{fg_hgcl_forward.8} parent=0 // pred_check
    _
  $region11: #{fg_hgcl_forward.8} parent=0 // pred_check_branch
    %20 = sbr.rel (0) target = $region13
  $region12: #{fg_hgcl_forward.8} parent=0 // pred_region
    _
  $region13: #{fg_hgcl_forward.8} parent=0 // pred_fallthru
    _
  // Predicated region
  $region14: #{fg_hgcl_forward.8} parent=0 // pred_check
    _
  $region15: #{fg_hgcl_forward.8} parent=0 // pred_check_branch
    %22 = sbr.rel (0) target = $region17
  $region16: #{fg_hgcl_forward.8} parent=0 // pred_region
    _
  $region17: #{fg_hgcl_forward.8} parent=0 // pred_fallthru
    _
  // Predicated region
  $region18: #{fg_hgcl_forward.8} parent=0 // pred_check
    _
  $region19: #{fg_hgcl_forward.8} parent=0 // pred_check_branch
    %24 = sbr.rel (0) target = $region21
  $region20: #{fg_hgcl_forward.8} parent=0 // pred_region
    _
  $region21: #{fg_hgcl_forward.8} parent=0 // pred_fallthru
    _
  // Predicated region
  $region22: #{fg_hgcl_forward.8} parent=0 // pred_check
    _
  $region23: #{fg_hgcl_forward.8} parent=0 // pred_check_branch
    %26 = sbr.rel (0) target = $region25
  $region24: #{fg_hgcl_forward.8} parent=0 // pred_region
    _
  $region25: #{fg_hgcl_forward.8} parent=0 // pred_fallthru
    _
  // Predicated region
  $region26: #{fg_hgcl_forward.8} parent=0 // pred_check
    _
  $region27: #{fg_hgcl_forward.8} parent=0 // pred_check_branch
    %28 = sbr.rel (0) target = $region29
  $region28: #{fg_hgcl_forward.8} parent=0 // pred_region
    _
  $region29: #{fg_hgcl_forward.8} parent=0 // pred_fallthru
    _
  // Predicated region
  $region30: #{fg_hgcl_forward.8} parent=0 // pred_check
    _
  $region31: #{fg_hgcl_forward.8} parent=0 // pred_check_branch
    %30 = sbr.rel (0) target = $region33
  $region32: #{fg_hgcl_forward.8} parent=0 // pred_region
    _
  $region33: #{fg_hgcl_forward.8} parent=0 // pred_fallthru
    _
  %p31 = scmp.eq.s32.totalorder 0, 0
  // Predicated region
  $region34: #{fg_hgcl_forward.8} parent=0 // pred_check
    %p32 = pneg %p31
  $region35: #{fg_hgcl_forward.8} parent=0 // pred_check_branch
    %34 = sbr.rel (%p32) target = $region37
  $region36: #{fg_hgcl_forward.8} parent=0 // pred_region
    %35 = vst [vmem:[#allocation2] sm:$0xff] 0.0
    %36 = vst [vmem:[#allocation2 + $0x8] sm:$0xff] 0.0
    %37 = vst [vmem:[#allocation2 + $0x10] sm:$0xff] 0.0
    %38 = vst [vmem:[#allocation2 + $0x18] sm:$0xff] 0.0
    %39 = vst [vmem:[#allocation2 + $0x20] sm:$0xff] 0.0
    %40 = vst [vmem:[#allocation2 + $0x28] sm:$0xff] 0.0
    %41 = vst [vmem:[#allocation2 + $0x30] sm:$0xff] 0.0
    %42 = vst [vmem:[#allocation2 + $0x38] sm:$0xff] 0.0
    %43 = vst [vmem:[#allocation2 + $0x40] sm:$0xff] 0.0
    %44 = vst [vmem:[#allocation2 + $0x48] sm:$0xff] 0.0
    %45 = vst [vmem:[#allocation2 + $0x50] sm:$0xff] 0.0
    %46 = vst [vmem:[#allocation2 + $0x58] sm:$0xff] 0.0
    %47 = vst [vmem:[#allocation2 + $0x60] sm:$0xff] 0.0
    %48 = vst [vmem:[#allocation2 + $0x68] sm:$0xff] 0.0
    %49 = vst [vmem:[#allocation2 + $0x70] sm:$0xff] 0.0
    %50 = vst [vmem:[#allocation2 + $0x78] sm:$0xff] 0.0
  $region37: #{fg_hgcl_forward.8} parent=0 // pred_fallthru
    _
  %v51 = vld [vmem:[#allocation2] sm:$0xff]
  %v52 = vld [vmem:[#allocation2 + $0x8] sm:$0xff]
  %v53 = vld [vmem:[#allocation2 + $0x10] sm:$0xff]
  %v54 = vld [vmem:[#allocation2 + $0x18] sm:$0xff]
  %v55 = vld [vmem:[#allocation2 + $0x20] sm:$0xff]
  %v56 = vld [vmem:[#allocation2 + $0x28] sm:$0xff]
  %v57 = vld [vmem:[#allocation2 + $0x30] sm:$0xff]
  %v58 = vld [vmem:[#allocation2 + $0x38] sm:$0xff]
  %v59 = vld [vmem:[#allocation2 + $0x40] sm:$0xff]
  %v60 = vld [vmem:[#allocation2 + $0x48] sm:$0xff]
  %v61 = vld [vmem:[#allocation2 + $0x50] sm:$0xff]
  %v62 = vld [vmem:[#allocation2 + $0x58] sm:$0xff]
  %v63 = vld [vmem:[#allocation2 + $0x60] sm:$0xff]
  %v64 = vld [vmem:[#allocation2 + $0x68] sm:$0xff]
  %v65 = vld [vmem:[#allocation2 + $0x70] sm:$0xff]
  %v66 = vld [vmem:[#allocation2 + $0x78] sm:$0xff]
  %v67 = vld [vmem:[%s0] sm:$0xf]
  %v68 = vld [vmem:[%s0 + $0x4] sm:$0xf]
  %v69 = vld [vmem:[%s0 + $0x8] sm:$0xf]
  %v70 = vld [vmem:[%s0 + $0xc] sm:$0xf]
  %v71 = vld [vmem:[%s0 + $0x10] sm:$0xf]
  %v72 = vld [vmem:[%s0 + $0x14] sm:$0xf]
  %v73 = vld [vmem:[%s0 + $0x18] sm:$0xf]
  %v74 = vld [vmem:[%s0 + $0x1c] sm:$0xf]
  %v75 = vld [vmem:[%s0 + $0x20] sm:$0xf]
  %v76 = vld [vmem:[%s0 + $0x24] sm:$0xf]
  %v77 = vld [vmem:[%s0 + $0x28] sm:$0xf]
  %v78 = vld [vmem:[%s0 + $0x2c] sm:$0xf]
  %v79 = vld [vmem:[%s0 + $0x30] sm:$0xf]
  %v80 = vld [vmem:[%s0 + $0x34] sm:$0xf]
  %v81 = vld [vmem:[%s0 + $0x38] sm:$0xf]
  %v82 = vld [vmem:[%s0 + $0x3c] sm:$0xf]
  %v83 = vunpack.c.l.bf16 %v67
  %v84 = vunpack.c.l.bf16 %v68
  %v85 = vunpack.c.l.bf16 %v69
  %v86 = vunpack.c.l.bf16 %v70
  %v87 = vunpack.c.l.bf16 %v71
  %v88 = vunpack.c.l.bf16 %v72
  %v89 = vunpack.c.l.bf16 %v73
  %v90 = vunpack.c.l.bf16 %v74
  %v91 = vunpack.c.l.bf16 %v75
  %v92 = vunpack.c.l.bf16 %v76
  %v93 = vunpack.c.l.bf16 %v77
  %v94 = vunpack.c.l.bf16 %v78
  %v95 = vunpack.c.l.bf16 %v79
  %v96 = vunpack.c.l.bf16 %v80
  %v97 = vunpack.c.l.bf16 %v81
  %v98 = vunpack.c.l.bf16 %v82
  %v99 = vld [vmem:[%s1] sm:$0xff]
  %v100 = vld [vmem:[%s1 + $0x8] sm:$0xff]
  %v101 = vld [vmem:[%s1 + $0x10] sm:$0xff]
  %v102 = vld [vmem:[%s1 + $0x18] sm:$0xff]
  %v103 = vld [vmem:[%s1 + $0x20] sm:$0xff]
  %v104 = vld [vmem:[%s1 + $0x28] sm:$0xff]
  %v105 = vld [vmem:[%s1 + $0x30] sm:$0xff]
  %v106 = vld [vmem:[%s1 + $0x38] sm:$0xff]
  %v107 = vld [vmem:[%s1 + $0x40] sm:$0xff]
  %v108 = vld [vmem:[%s1 + $0x48] sm:$0xff]
  %v109 = vld [vmem:[%s1 + $0x50] sm:$0xff]
  %v110 = vld [vmem:[%s1 + $0x58] sm:$0xff]
  %v111 = vld [vmem:[%s1 + $0x60] sm:$0xff]
  %v112 = vld [vmem:[%s1 + $0x68] sm:$0xff]
  %v113 = vld [vmem:[%s1 + $0x70] sm:$0xff]
  %v114 = vld [vmem:[%s1 + $0x78] sm:$0xff]
  %115 = vmatprep.subr.mxu0 0.0
  %116 = vmatpush1.msra.mxu0 %v114
  %117 = vmatprep.subr.mxu0 0.0
  %118 = vmatpush1.msra.mxu0 %v113
  %119 = vmatprep.subr.mxu0 0.0
  %120 = vmatpush1.msra.mxu0 %v112
  %121 = vmatprep.subr.mxu0 0.0
  %122 = vmatpush1.msra.mxu0 %v111
  %123 = vmatprep.subr.mxu0 0.0
  %124 = vmatpush1.msra.mxu0 %v110
  %125 = vmatprep.subr.mxu0 0.0
  %126 = vmatpush1.msra.mxu0 %v109
  %127 = vmatprep.subr.mxu0 0.0
  %128 = vmatpush1.msra.mxu0 %v108
  %129 = vmatprep.subr.mxu0 0.0
  %130 = vmatpush1.msra.mxu0 %v107
  %131 = vmatprep.subr.mxu0 0.0
  %132 = vmatpush1.msra.mxu0 %v106
  %133 = vmatprep.subr.mxu0 0.0
  %134 = vmatpush1.msra.mxu0 %v105
  %135 = vmatprep.subr.mxu0 0.0
  %136 = vmatpush1.msra.mxu0 %v104
  %137 = vmatprep.subr.mxu0 0.0
  %138 = vmatpush1.msra.mxu0 %v103
  %139 = vmatprep.subr.mxu0 0.0
  %140 = vmatpush1.msra.mxu0 %v102
  %141 = vmatprep.subr.mxu0 0.0
  %142 = vmatpush1.msra.mxu0 %v101
  %143 = vmatprep.subr.mxu0 0.0
  %144 = vmatpush1.msra.mxu0 %v100
  %145 = vmatprep.subr.mxu0 0.0
  %146 = vmatpush1.msra.mxu0 %v99
  %147 = vmatprep.subr.mxu0 0.0
  %148 = vmatpush2.msra.mxu0 0.0
  %149 = vmatprep.subr.mxu0 0.0
  %150 = vmatpush2.msra.mxu0 0.0
  %151 = vmatprep.subr.mxu0 0.0
  %152 = vmatpush2.msra.mxu0 0.0
  %153 = vmatprep.subr.mxu0 0.0
  %154 = vmatpush2.msra.mxu0 0.0
  %155 = vmatprep.subr.mxu0 0.0
  %156 = vmatpush2.msra.mxu0 0.0
  %157 = vmatprep.subr.mxu0 0.0
  %158 = vmatpush2.msra.mxu0 0.0
  %159 = vmatprep.subr.mxu0 0.0
  %160 = vmatpush2.msra.mxu0 0.0
  %161 = vmatprep.subr.mxu0 0.0
  %162 = vmatpush2.msra.mxu0 0.0
  %163 = vmatprep.subr.mxu0 0.0
  %164 = vmatpush2.msra.mxu0 0.0
  %165 = vmatprep.subr.mxu0 0.0
  %166 = vmatpush2.msra.mxu0 0.0
  %167 = vmatprep.subr.mxu0 0.0
  %168 = vmatpush2.msra.mxu0 0.0
  %169 = vmatprep.subr.mxu0 0.0
  %170 = vmatpush2.msra.mxu0 0.0
  %171 = vmatprep.subr.mxu0 0.0
  %172 = vmatpush2.msra.mxu0 0.0
  %173 = vmatprep.subr.mxu0 0.0
  %174 = vmatpush2.msra.mxu0 0.0
  %175 = vmatprep.subr.mxu0 0.0
  %176 = vmatpush2.msra.mxu0 0.0
  %177 = vmatprep.subr.mxu0 0.0
  %178 = vmatpush2.msra.mxu0 0.0
  %179 = vmatprep.mubr.f32.mxu0 0.0
  %180 = vmatmul.mubr.f32.gmra.mxu0 %v83
  %v181 = vpop.f32.mrf.mxu0
  %v182 = vadd.f32 0.0, %v181
  %v183 = vpop.f32.mrf.mxu0
  %184 = vmatprep.mubr.f32.mxu0 0.0
  %185 = vmatmul.mubr.f32.gmra.mxu0 %v84
  %v186 = vpop.f32.mrf.mxu0
  %v187 = vadd.f32 0.0, %v186
  %v188 = vpop.f32.mrf.mxu0
  %189 = vmatprep.mubr.f32.mxu0 0.0
  %190 = vmatmul.mubr.f32.gmra.mxu0 %v85
  %v191 = vpop.f32.mrf.mxu0
  %v192 = vadd.f32 0.0, %v191
  %v193 = vpop.f32.mrf.mxu0
  %194 = vmatprep.mubr.f32.mxu0 0.0
  %195 = vmatmul.mubr.f32.gmra.mxu0 %v86
  %v196 = vpop.f32.mrf.mxu0
  %v197 = vadd.f32 0.0, %v196
  %v198 = vpop.f32.mrf.mxu0
  %199 = vmatprep.mubr.f32.mxu0 0.0
  %200 = vmatmul.mubr.f32.gmra.mxu0 %v87
  %v201 = vpop.f32.mrf.mxu0
  %v202 = vadd.f32 0.0, %v201
  %v203 = vpop.f32.mrf.mxu0
  %204 = vmatprep.mubr.f32.mxu0 0.0
  %205 = vmatmul.mubr.f32.gmra.mxu0 %v88
  %v206 = vpop.f32.mrf.mxu0
  %v207 = vadd.f32 0.0, %v206
  %v208 = vpop.f32.mrf.mxu0
  %209 = vmatprep.mubr.f32.mxu0 0.0
  %210 = vmatmul.mubr.f32.gmra.mxu0 %v89
  %v211 = vpop.f32.mrf.mxu0
  %v212 = vadd.f32 0.0, %v211
  %v213 = vpop.f32.mrf.mxu0
  %214 = vmatprep.mubr.f32.mxu0 0.0
  %215 = vmatmul.mubr.f32.gmra.mxu0 %v90
  %v216 = vpop.f32.mrf.mxu0
  %v217 = vadd.f32 0.0, %v216
  %v218 = vpop.f32.mrf.mxu0
  %219 = vmatprep.mubr.f32.mxu0 0.0
  %220 = vmatmul.mubr.f32.gmra.mxu0 %v91
  %v221 = vpop.f32.mrf.mxu0
  %v222 = vadd.f32 0.0, %v221
  %v223 = vpop.f32.mrf.mxu0
  %224 = vmatprep.mubr.f32.mxu0 0.0
  %225 = vmatmul.mubr.f32.gmra.mxu0 %v92
  %v226 = vpop.f32.mrf.mxu0
  %v227 = vadd.f32 0.0, %v226
  %v228 = vpop.f32.mrf.mxu0
  %229 = vmatprep.mubr.f32.mxu0 0.0
  %230 = vmatmul.mubr.f32.gmra.mxu0 %v93
  %v231 = vpop.f32.mrf.mxu0
  %v232 = vadd.f32 0.0, %v231
  %v233 = vpop.f32.mrf.mxu0
  %234 = vmatprep.mubr.f32.mxu0 0.0
  %235 = vmatmul.mubr.f32.gmra.mxu0 %v94
  %v236 = vpop.f32.mrf.mxu0
  %v237 = vadd.f32 0.0, %v236
  %v238 = vpop.f32.mrf.mxu0
  %239 = vmatprep.mubr.f32.mxu0 0.0
  %240 = vmatmul.mubr.f32.gmra.mxu0 %v95
  %v241 = vpop.f32.mrf.mxu0
  %v242 = vadd.f32 0.0, %v241
  %v243 = vpop.f32.mrf.mxu0
  %244 = vmatprep.mubr.f32.mxu0 0.0
  %245 = vmatmul.mubr.f32.gmra.mxu0 %v96
  %v246 = vpop.f32.mrf.mxu0
  %v247 = vadd.f32 0.0, %v246
  %v248 = vpop.f32.mrf.mxu0
  %249 = vmatprep.mubr.f32.mxu0 0.0
  %250 = vmatmul.mubr.f32.gmra.mxu0 %v97
  %v251 = vpop.f32.mrf.mxu0
  %v252 = vadd.f32 0.0, %v251
  %v253 = vpop.f32.mrf.mxu0
  %254 = vmatprep.mubr.f32.mxu0 0.0
  %255 = vmatmul.mubr.f32.gmra.mxu0 %v98
  %v256 = vpop.f32.mrf.mxu0
  %v257 = vadd.f32 0.0, %v256
  %v258 = vpop.f32.mrf.mxu0
  %259 = vdwg.mxu0
  %v260 = vadd.f32 %v51, %v182
  %v261 = vadd.f32 %v52, %v187
  %v262 = vadd.f32 %v53, %v192
  %v263 = vadd.f32 %v54, %v197
  %v264 = vadd.f32 %v55, %v202
  %v265 = vadd.f32 %v56, %v207
  %v266 = vadd.f32 %v57, %v212
  %v267 = vadd.f32 %v58, %v217
  %v268 = vadd.f32 %v59, %v222
  %v269 = vadd.f32 %v60, %v227
  %v270 = vadd.f32 %v61, %v232
  %v271 = vadd.f32 %v62, %v237
  %v272 = vadd.f32 %v63, %v242
  %v273 = vadd.f32 %v64, %v247
  %v274 = vadd.f32 %v65, %v252
  %v275 = vadd.f32 %v66, %v257
  %276 = vst [vmem:[#allocation2] sm:$0xff] %v260
  %277 = vst [vmem:[#allocation2 + $0x8] sm:$0xff] %v261
  %278 = vst [vmem:[#allocation2 + $0x10] sm:$0xff] %v262
  %279 = vst [vmem:[#allocation2 + $0x18] sm:$0xff] %v263
  %280 = vst [vmem:[#allocation2 + $0x20] sm:$0xff] %v264
  %281 = vst [vmem:[#allocation2 + $0x28] sm:$0xff] %v265
  %282 = vst [vmem:[#allocation2 + $0x30] sm:$0xff] %v266
  %283 = vst [vmem:[#allocation2 + $0x38] sm:$0xff] %v267
  %284 = vst [vmem:[#allocation2 + $0x40] sm:$0xff] %v268
  %285 = vst [vmem:[#allocation2 + $0x48] sm:$0xff] %v269
  %286 = vst [vmem:[#allocation2 + $0x50] sm:$0xff] %v270
  %287 = vst [vmem:[#allocation2 + $0x58] sm:$0xff] %v271
  %288 = vst [vmem:[#allocation2 + $0x60] sm:$0xff] %v272
  %289 = vst [vmem:[#allocation2 + $0x68] sm:$0xff] %v273
  %290 = vst [vmem:[#allocation2 + $0x70] sm:$0xff] %v274
  %291 = vst [vmem:[#allocation2 + $0x78] sm:$0xff] %v275
  // Predicated region
  $region38: #{fg_hgcl_forward.8} parent=0 // pred_check
    %p292 = pneg %p31
  $region39: #{fg_hgcl_forward.8} parent=0 // pred_check_branch
    %294 = sbr.rel (%p292) target = $region41
  $region40: #{fg_hgcl_forward.8} parent=0 // pred_region
    %s295 = sld [smem:[#allocation3]]
    %v296 = vld [vmem:[%s2] sm:$0xff]
    %v297 = vld [vmem:[%s2 + $0x8] sm:$0xff]
    %v298 = vld [vmem:[%s2 + $0x10] sm:$0xff]
    %v299 = vld [vmem:[%s2 + $0x18] sm:$0xff]
    %v300 = vld [vmem:[%s2 + $0x20] sm:$0xff]
    %v301 = vld [vmem:[%s2 + $0x28] sm:$0xff]
    %v302 = vld [vmem:[%s2 + $0x30] sm:$0xff]
    %v303 = vld [vmem:[%s2 + $0x38] sm:$0xff]
    %v304 = vld [vmem:[%s2 + $0x40] sm:$0xff]
    %v305 = vld [vmem:[%s2 + $0x48] sm:$0xff]
    %v306 = vld [vmem:[%s2 + $0x50] sm:$0xff]
    %v307 = vld [vmem:[%s2 + $0x58] sm:$0xff]
    %v308 = vld [vmem:[%s2 + $0x60] sm:$0xff]
    %v309 = vld [vmem:[%s2 + $0x68] sm:$0xff]
    %v310 = vld [vmem:[%s2 + $0x70] sm:$0xff]
    %v311 = vld [vmem:[%s2 + $0x78] sm:$0xff]
    %vm312 = vcmp.ge.f32.partialorder %v296, 0.0
    %vm313 = vcmp.ge.f32.partialorder %v297, 0.0
    %vm314 = vcmp.ge.f32.partialorder %v298, 0.0
    %vm315 = vcmp.ge.f32.partialorder %v299, 0.0
    %vm316 = vcmp.ge.f32.partialorder %v300, 0.0
    %vm317 = vcmp.ge.f32.partialorder %v301, 0.0
    %vm318 = vcmp.ge.f32.partialorder %v302, 0.0
    %vm319 = vcmp.ge.f32.partialorder %v303, 0.0
    %vm320 = vcmp.ge.f32.partialorder %v304, 0.0
    %vm321 = vcmp.ge.f32.partialorder %v305, 0.0
    %vm322 = vcmp.ge.f32.partialorder %v306, 0.0
    %vm323 = vcmp.ge.f32.partialorder %v307, 0.0
    %vm324 = vcmp.ge.f32.partialorder %v308, 0.0
    %vm325 = vcmp.ge.f32.partialorder %v309, 0.0
    %vm326 = vcmp.ge.f32.partialorder %v310, 0.0
    %vm327 = vcmp.ge.f32.partialorder %v311, 0.0
    %v328 = vstv %s295
    %v329 = vmul.f32 %v328, %v296
    %v330 = vmul.f32 %v328, %v297
    %v331 = vmul.f32 %v328, %v298
    %v332 = vmul.f32 %v328, %v299
    %v333 = vmul.f32 %v328, %v300
    %v334 = vmul.f32 %v328, %v301
    %v335 = vmul.f32 %v328, %v302
    %v336 = vmul.f32 %v328, %v303
    %v337 = vmul.f32 %v328, %v304
    %v338 = vmul.f32 %v328, %v305
    %v339 = vmul.f32 %v328, %v306
    %v340 = vmul.f32 %v328, %v307
    %v341 = vmul.f32 %v328, %v308
    %v342 = vmul.f32 %v328, %v309
    %v343 = vmul.f32 %v328, %v310
    %v344 = vmul.f32 %v328, %v311
    %v345 = vsel %vm312, %v296, %v329
    %v346 = vsel %vm313, %v297, %v330
    %v347 = vsel %vm314, %v298, %v331
    %v348 = vsel %vm315, %v299, %v332
    %v349 = vsel %vm316, %v300, %v333
    %v350 = vsel %vm317, %v301, %v334
    %v351 = vsel %vm318, %v302, %v335
    %v352 = vsel %vm319, %v303, %v336
    %v353 = vsel %vm320, %v304, %v337
    %v354 = vsel %vm321, %v305, %v338
    %v355 = vsel %vm322, %v306, %v339
    %v356 = vsel %vm323, %v307, %v340
    %v357 = vsel %vm324, %v308, %v341
    %v358 = vsel %vm325, %v309, %v342
    %v359 = vsel %vm326, %v310, %v343
    %v360 = vsel %vm327, %v311, %v344
    %v361 = vld [vmem:[#allocation2] sm:$0xff]
    %v362 = vld [vmem:[#allocation2 + $0x8] sm:$0xff]
    %v363 = vld [vmem:[#allocation2 + $0x10] sm:$0xff]
    %v364 = vld [vmem:[#allocation2 + $0x18] sm:$0xff]
    %v365 = vld [vmem:[#allocation2 + $0x20] sm:$0xff]
    %v366 = vld [vmem:[#allocation2 + $0x28] sm:$0xff]
    %v367 = vld [vmem:[#allocation2 + $0x30] sm:$0xff]
    %v368 = vld [vmem:[#allocation2 + $0x38] sm:$0xff]
    %v369 = vld [vmem:[#allocation2 + $0x40] sm:$0xff]
    %v370 = vld [vmem:[#allocation2 + $0x48] sm:$0xff]
    %v371 = vld [vmem:[#allocation2 + $0x50] sm:$0xff]
    %v372 = vld [vmem:[#allocation2 + $0x58] sm:$0xff]
    %v373 = vld [vmem:[#allocation2 + $0x60] sm:$0xff]
    %v374 = vld [vmem:[#allocation2 + $0x68] sm:$0xff]
    %v375 = vld [vmem:[#allocation2 + $0x70] sm:$0xff]
    %v376 = vld [vmem:[#allocation2 + $0x78] sm:$0xff]
    %v377 = vadd.f32 %v361, %v345
    %v378 = vadd.f32 %v362, %v346
    %v379 = vadd.f32 %v363, %v347
    %v380 = vadd.f32 %v364, %v348
    %v381 = vadd.f32 %v365, %v349
    %v382 = vadd.f32 %v366, %v350
    %v383 = vadd.f32 %v367, %v351
    %v384 = vadd.f32 %v368, %v352
    %v385 = vadd.f32 %v369, %v353
    %v386 = vadd.f32 %v370, %v354
    %v387 = vadd.f32 %v371, %v355
    %v388 = vadd.f32 %v372, %v356
    %v389 = vadd.f32 %v373, %v357
    %v390 = vadd.f32 %v374, %v358
    %v391 = vadd.f32 %v375, %v359
    %v392 = vadd.f32 %v376, %v360
    %v393 = vld [vmem:[%s3] sm:$0xff]
    %v394 = vld [vmem:[%s3 + $0x8] sm:$0xff]
    %v395 = vld [vmem:[%s3 + $0x10] sm:$0xff]
    %v396 = vld [vmem:[%s3 + $0x18] sm:$0xff]
    %v397 = vld [vmem:[%s3 + $0x20] sm:$0xff]
    %v398 = vld [vmem:[%s3 + $0x28] sm:$0xff]
    %v399 = vld [vmem:[%s3 + $0x30] sm:$0xff]
    %v400 = vld [vmem:[%s3 + $0x38] sm:$0xff]
    %v401 = vld [vmem:[%s3 + $0x40] sm:$0xff]
    %v402 = vld [vmem:[%s3 + $0x48] sm:$0xff]
    %v403 = vld [vmem:[%s3 + $0x50] sm:$0xff]
    %v404 = vld [vmem:[%s3 + $0x58] sm:$0xff]
    %v405 = vld [vmem:[%s3 + $0x60] sm:$0xff]
    %v406 = vld [vmem:[%s3 + $0x68] sm:$0xff]
    %v407 = vld [vmem:[%s3 + $0x70] sm:$0xff]
    %v408 = vld [vmem:[%s3 + $0x78] sm:$0xff]
    %410 = vset.pattern.permute.xlu0 0
    %411 = vperm.xlu0 %410, %v393
    %v412 = vpop.permute.xlu0 %411
    %415 = vset.pattern.permute.xlu0 0
    %416 = vperm.xlu0 %415, %v394
    %v417 = vpop.permute.xlu0 %416
    %420 = vset.pattern.permute.xlu0 0
    %421 = vperm.xlu0 %420, %v395
    %v422 = vpop.permute.xlu0 %421
    %425 = vset.pattern.permute.xlu0 0
    %426 = vperm.xlu0 %425, %v396
    %v427 = vpop.permute.xlu0 %426
    %430 = vset.pattern.permute.xlu0 0
    %431 = vperm.xlu0 %430, %v397
    %v432 = vpop.permute.xlu0 %431
    %435 = vset.pattern.permute.xlu0 0
    %436 = vperm.xlu0 %435, %v398
    %v437 = vpop.permute.xlu0 %436
    %440 = vset.pattern.permute.xlu0 0
    %441 = vperm.xlu0 %440, %v399
    %v442 = vpop.permute.xlu0 %441
    %445 = vset.pattern.permute.xlu0 0
    %446 = vperm.xlu0 %445, %v400
    %v447 = vpop.permute.xlu0 %446
    %450 = vset.pattern.permute.xlu0 0
    %451 = vperm.xlu0 %450, %v401
    %v452 = vpop.permute.xlu0 %451
    %455 = vset.pattern.permute.xlu0 0
    %456 = vperm.xlu0 %455, %v402
    %v457 = vpop.permute.xlu0 %456
    %460 = vset.pattern.permute.xlu0 0
    %461 = vperm.xlu0 %460, %v403
    %v462 = vpop.permute.xlu0 %461
    %465 = vset.pattern.permute.xlu0 0
    %466 = vperm.xlu0 %465, %v404
    %v467 = vpop.permute.xlu0 %466
    %470 = vset.pattern.permute.xlu0 0
    %471 = vperm.xlu0 %470, %v405
    %v472 = vpop.permute.xlu0 %471
    %475 = vset.pattern.permute.xlu0 0
    %476 = vperm.xlu0 %475, %v406
    %v477 = vpop.permute.xlu0 %476
    %480 = vset.pattern.permute.xlu0 0
    %481 = vperm.xlu0 %480, %v407
    %v482 = vpop.permute.xlu0 %481
    %485 = vset.pattern.permute.xlu0 0
    %486 = vperm.xlu0 %485, %v408
    %v487 = vpop.permute.xlu0 %486
    %v489 = vmul.f32 %v377, %v412
    %v490 = vmul.f32 %v378, %v417
    %v491 = vmul.f32 %v379, %v422
    %v492 = vmul.f32 %v380, %v427
    %v493 = vmul.f32 %v381, %v432
    %v494 = vmul.f32 %v382, %v437
    %v495 = vmul.f32 %v383, %v442
    %v496 = vmul.f32 %v384, %v447
    %v497 = vmul.f32 %v385, %v452
    %v498 = vmul.f32 %v386, %v457
    %v499 = vmul.f32 %v387, %v462
    %v500 = vmul.f32 %v388, %v467
    %v501 = vmul.f32 %v389, %v472
    %v502 = vmul.f32 %v390, %v477
    %v503 = vmul.f32 %v391, %v482
    %v504 = vmul.f32 %v392, %v487
    %v505 = vld [vmem:[%s4] sm:$0xff]
    %v506 = vld [vmem:[%s4 + $0x8] sm:$0xff]
    %v507 = vld [vmem:[%s4 + $0x10] sm:$0xff]
    %v508 = vld [vmem:[%s4 + $0x18] sm:$0xff]
    %v509 = vld [vmem:[%s4 + $0x20] sm:$0xff]
    %v510 = vld [vmem:[%s4 + $0x28] sm:$0xff]
    %v511 = vld [vmem:[%s4 + $0x30] sm:$0xff]
    %v512 = vld [vmem:[%s4 + $0x38] sm:$0xff]
    %v513 = vld [vmem:[%s4 + $0x40] sm:$0xff]
    %v514 = vld [vmem:[%s4 + $0x48] sm:$0xff]
    %v515 = vld [vmem:[%s4 + $0x50] sm:$0xff]
    %v516 = vld [vmem:[%s4 + $0x58] sm:$0xff]
    %v517 = vld [vmem:[%s4 + $0x60] sm:$0xff]
    %v518 = vld [vmem:[%s4 + $0x68] sm:$0xff]
    %v519 = vld [vmem:[%s4 + $0x70] sm:$0xff]
    %v520 = vld [vmem:[%s4 + $0x78] sm:$0xff]
    %v521 = vld [vmem:[%s5] sm:$0x1]
    %v523 = vlaneseq
    %v524 = vshrl.u32 %v523, 7
    %v525 = vsub.s32 0, %v524
    %v526 = vrot.slane %v521, %v525
    %528 = vmatprep.subr.mxu0 0.0
    %529 = vmatpush1.msra.mxu0 %v520
    %530 = vmatprep.subr.mxu0 0.0
    %531 = vmatpush1.msra.mxu0 %v519
    %532 = vmatprep.subr.mxu0 0.0
    %533 = vmatpush1.msra.mxu0 %v518
    %534 = vmatprep.subr.mxu0 0.0
    %535 = vmatpush1.msra.mxu0 %v517
    %536 = vmatprep.subr.mxu0 0.0
    %537 = vmatpush1.msra.mxu0 %v516
    %538 = vmatprep.subr.mxu0 0.0
    %539 = vmatpush1.msra.mxu0 %v515
    %540 = vmatprep.subr.mxu0 0.0
    %541 = vmatpush1.msra.mxu0 %v514
    %542 = vmatprep.subr.mxu0 0.0
    %543 = vmatpush1.msra.mxu0 %v513
    %544 = vmatprep.subr.mxu0 0.0
    %545 = vmatpush1.msra.mxu0 %v512
    %546 = vmatprep.subr.mxu0 0.0
    %547 = vmatpush1.msra.mxu0 %v511
    %548 = vmatprep.subr.mxu0 0.0
    %549 = vmatpush1.msra.mxu0 %v510
    %550 = vmatprep.subr.mxu0 0.0
    %551 = vmatpush1.msra.mxu0 %v509
    %552 = vmatprep.subr.mxu0 0.0
    %553 = vmatpush1.msra.mxu0 %v508
    %554 = vmatprep.subr.mxu0 0.0
    %555 = vmatpush1.msra.mxu0 %v507
    %556 = vmatprep.subr.mxu0 0.0
    %557 = vmatpush1.msra.mxu0 %v506
    %558 = vmatprep.subr.mxu0 0.0
    %559 = vmatpush1.msra.mxu0 %v505
    %560 = vmatprep.subr.mxu0 0.0
    %561 = vmatpush2.msra.mxu0 0.0
    %562 = vmatprep.subr.mxu0 0.0
    %563 = vmatpush2.msra.mxu0 0.0
    %564 = vmatprep.subr.mxu0 0.0
    %565 = vmatpush2.msra.mxu0 0.0
    %566 = vmatprep.subr.mxu0 0.0
    %567 = vmatpush2.msra.mxu0 0.0
    %568 = vmatprep.subr.mxu0 0.0
    %569 = vmatpush2.msra.mxu0 0.0
    %570 = vmatprep.subr.mxu0 0.0
    %571 = vmatpush2.msra.mxu0 0.0
    %572 = vmatprep.subr.mxu0 0.0
    %573 = vmatpush2.msra.mxu0 0.0
    %574 = vmatprep.subr.mxu0 0.0
    %575 = vmatpush2.msra.mxu0 0.0
    %576 = vmatprep.subr.mxu0 0.0
    %577 = vmatpush2.msra.mxu0 0.0
    %578 = vmatprep.subr.mxu0 0.0
    %579 = vmatpush2.msra.mxu0 0.0
    %580 = vmatprep.subr.mxu0 0.0
    %581 = vmatpush2.msra.mxu0 0.0
    %582 = vmatprep.subr.mxu0 0.0
    %583 = vmatpush2.msra.mxu0 0.0
    %584 = vmatprep.subr.mxu0 0.0
    %585 = vmatpush2.msra.mxu0 0.0
    %586 = vmatprep.subr.mxu0 0.0
    %587 = vmatpush2.msra.mxu0 0.0
    %588 = vmatprep.subr.mxu0 0.0
    %589 = vmatpush2.msra.mxu0 0.0
    %590 = vmatprep.subr.mxu0 0.0
    %591 = vmatpush2.msra.mxu0 0.0
    %592 = vmatprep.mubr.f32.mxu0 0.0
    %593 = vmatmul.mubr.f32.gmra.mxu0 %v489
    %v594 = vpop.f32.mrf.mxu0
    %v595 = vadd.f32 %v526, %v594
    %v596 = vpop.f32.mrf.mxu0
    %597 = vmatprep.mubr.f32.mxu0 0.0
    %598 = vmatmul.mubr.f32.gmra.mxu0 %v490
    %v599 = vpop.f32.mrf.mxu0
    %v600 = vadd.f32 %v526, %v599
    %v601 = vpop.f32.mrf.mxu0
    %602 = vmatprep.mubr.f32.mxu0 0.0
    %603 = vmatmul.mubr.f32.gmra.mxu0 %v491
    %v604 = vpop.f32.mrf.mxu0
    %v605 = vadd.f32 %v526, %v604
    %v606 = vpop.f32.mrf.mxu0
    %607 = vmatprep.mubr.f32.mxu0 0.0
    %608 = vmatmul.mubr.f32.gmra.mxu0 %v492
    %v609 = vpop.f32.mrf.mxu0
    %v610 = vadd.f32 %v526, %v609
    %v611 = vpop.f32.mrf.mxu0
    %612 = vmatprep.mubr.f32.mxu0 0.0
    %613 = vmatmul.mubr.f32.gmra.mxu0 %v493
    %v614 = vpop.f32.mrf.mxu0
    %v615 = vadd.f32 %v526, %v614
    %v616 = vpop.f32.mrf.mxu0
    %617 = vmatprep.mubr.f32.mxu0 0.0
    %618 = vmatmul.mubr.f32.gmra.mxu0 %v494
    %v619 = vpop.f32.mrf.mxu0
    %v620 = vadd.f32 %v526, %v619
    %v621 = vpop.f32.mrf.mxu0
    %622 = vmatprep.mubr.f32.mxu0 0.0
    %623 = vmatmul.mubr.f32.gmra.mxu0 %v495
    %v624 = vpop.f32.mrf.mxu0
    %v625 = vadd.f32 %v526, %v624
    %v626 = vpop.f32.mrf.mxu0
    %627 = vmatprep.mubr.f32.mxu0 0.0
    %628 = vmatmul.mubr.f32.gmra.mxu0 %v496
    %v629 = vpop.f32.mrf.mxu0
    %v630 = vadd.f32 %v526, %v629
    %v631 = vpop.f32.mrf.mxu0
    %632 = vmatprep.mubr.f32.mxu0 0.0
    %633 = vmatmul.mubr.f32.gmra.mxu0 %v497
    %v634 = vpop.f32.mrf.mxu0
    %v635 = vadd.f32 %v526, %v634
    %v636 = vpop.f32.mrf.mxu0
    %637 = vmatprep.mubr.f32.mxu0 0.0
    %638 = vmatmul.mubr.f32.gmra.mxu0 %v498
    %v639 = vpop.f32.mrf.mxu0
    %v640 = vadd.f32 %v526, %v639
    %v641 = vpop.f32.mrf.mxu0
    %642 = vmatprep.mubr.f32.mxu0 0.0
    %643 = vmatmul.mubr.f32.gmra.mxu0 %v499
    %v644 = vpop.f32.mrf.mxu0
    %v645 = vadd.f32 %v526, %v644
    %v646 = vpop.f32.mrf.mxu0
    %647 = vmatprep.mubr.f32.mxu0 0.0
    %648 = vmatmul.mubr.f32.gmra.mxu0 %v500
    %v649 = vpop.f32.mrf.mxu0
    %v650 = vadd.f32 %v526, %v649
    %v651 = vpop.f32.mrf.mxu0
    %652 = vmatprep.mubr.f32.mxu0 0.0
    %653 = vmatmul.mubr.f32.gmra.mxu0 %v501
    %v654 = vpop.f32.mrf.mxu0
    %v655 = vadd.f32 %v526, %v654
    %v656 = vpop.f32.mrf.mxu0
    %657 = vmatprep.mubr.f32.mxu0 0.0
    %658 = vmatmul.mubr.f32.gmra.mxu0 %v502
    %v659 = vpop.f32.mrf.mxu0
    %v660 = vadd.f32 %v526, %v659
    %v661 = vpop.f32.mrf.mxu0
    %662 = vmatprep.mubr.f32.mxu0 0.0
    %663 = vmatmul.mubr.f32.gmra.mxu0 %v503
    %v664 = vpop.f32.mrf.mxu0
    %v665 = vadd.f32 %v526, %v664
    %v666 = vpop.f32.mrf.mxu0
    %667 = vmatprep.mubr.f32.mxu0 0.0
    %668 = vmatmul.mubr.f32.gmra.mxu0 %v504
    %v669 = vpop.f32.mrf.mxu0
    %v670 = vadd.f32 %v526, %v669
    %v671 = vpop.f32.mrf.mxu0
    %672 = vdwg.mxu0
    %s673 = sld [smem:[#allocation4]]
    %vm674 = vcmp.ge.f32.partialorder %v595, 0.0
    %vm675 = vcmp.ge.f32.partialorder %v600, 0.0
    %vm676 = vcmp.ge.f32.partialorder %v605, 0.0
    %vm677 = vcmp.ge.f32.partialorder %v610, 0.0
    %vm678 = vcmp.ge.f32.partialorder %v615, 0.0
    %vm679 = vcmp.ge.f32.partialorder %v620, 0.0
    %vm680 = vcmp.ge.f32.partialorder %v625, 0.0
    %vm681 = vcmp.ge.f32.partialorder %v630, 0.0
    %vm682 = vcmp.ge.f32.partialorder %v635, 0.0
    %vm683 = vcmp.ge.f32.partialorder %v640, 0.0
    %vm684 = vcmp.ge.f32.partialorder %v645, 0.0
    %vm685 = vcmp.ge.f32.partialorder %v650, 0.0
    %vm686 = vcmp.ge.f32.partialorder %v655, 0.0
    %vm687 = vcmp.ge.f32.partialorder %v660, 0.0
    %vm688 = vcmp.ge.f32.partialorder %v665, 0.0
    %vm689 = vcmp.ge.f32.partialorder %v670, 0.0
    %v690 = vstv %s673
    %v691 = vmul.f32 %v690, %v595
    %v692 = vmul.f32 %v690, %v600
    %v693 = vmul.f32 %v690, %v605
    %v694 = vmul.f32 %v690, %v610
    %v695 = vmul.f32 %v690, %v615
    %v696 = vmul.f32 %v690, %v620
    %v697 = vmul.f32 %v690, %v625
    %v698 = vmul.f32 %v690, %v630
    %v699 = vmul.f32 %v690, %v635
    %v700 = vmul.f32 %v690, %v640
    %v701 = vmul.f32 %v690, %v645
    %v702 = vmul.f32 %v690, %v650
    %v703 = vmul.f32 %v690, %v655
    %v704 = vmul.f32 %v690, %v660
    %v705 = vmul.f32 %v690, %v665
    %v706 = vmul.f32 %v690, %v670
    %v707 = vsel %vm674, %v595, %v691
    %v708 = vsel %vm675, %v600, %v692
    %v709 = vsel %vm676, %v605, %v693
    %v710 = vsel %vm677, %v610, %v694
    %v711 = vsel %vm678, %v615, %v695
    %v712 = vsel %vm679, %v620, %v696
    %v713 = vsel %vm680, %v625, %v697
    %v714 = vsel %vm681, %v630, %v698
    %v715 = vsel %vm682, %v635, %v699
    %v716 = vsel %vm683, %v640, %v700
    %v717 = vsel %vm684, %v645, %v701
    %v718 = vsel %vm685, %v650, %v702
    %v719 = vsel %vm686, %v655, %v703
    %v720 = vsel %vm687, %v660, %v704
    %v721 = vsel %vm688, %v665, %v705
    %v722 = vsel %vm689, %v670, %v706
    %723 = vst [vmem:[%s8] sm:$0xff] %v707
    %724 = vst [vmem:[%s8 + $0x8] sm:$0xff] %v708
    %725 = vst [vmem:[%s8 + $0x10] sm:$0xff] %v709
    %726 = vst [vmem:[%s8 + $0x18] sm:$0xff] %v710
    %727 = vst [vmem:[%s8 + $0x20] sm:$0xff] %v711
    %728 = vst [vmem:[%s8 + $0x28] sm:$0xff] %v712
    %729 = vst [vmem:[%s8 + $0x30] sm:$0xff] %v713
    %730 = vst [vmem:[%s8 + $0x38] sm:$0xff] %v714
    %731 = vst [vmem:[%s8 + $0x40] sm:$0xff] %v715
    %732 = vst [vmem:[%s8 + $0x48] sm:$0xff] %v716
    %733 = vst [vmem:[%s8 + $0x50] sm:$0xff] %v717
    %734 = vst [vmem:[%s8 + $0x58] sm:$0xff] %v718
    %735 = vst [vmem:[%s8 + $0x60] sm:$0xff] %v719
    %736 = vst [vmem:[%s8 + $0x68] sm:$0xff] %v720
    %737 = vst [vmem:[%s8 + $0x70] sm:$0xff] %v721
    %738 = vst [vmem:[%s8 + $0x78] sm:$0xff] %v722
  $region41: #{fg_hgcl_forward.8} parent=0 // pred_fallthru
    _
  // Predicated region
  $region42: #{fg_hgcl_forward.8} parent=0 // pred_check
    _
  $region43: #{fg_hgcl_forward.8} parent=0 // pred_check_branch
    %740 = sbr.rel (0) target = $region45
  $region44: #{fg_hgcl_forward.8} parent=0 // pred_region
    _
  $region45: #{fg_hgcl_forward.8} parent=0 // pred_fallthru
    _
  // Predicated region
  $region46: #{fg_hgcl_forward.8} parent=0 // pred_check
    _
  $region47: #{fg_hgcl_forward.8} parent=0 // pred_check_branch
    %742 = sbr.rel (0) target = $region49
  $region48: #{fg_hgcl_forward.8} parent=0 // pred_region
    _
  $region49: #{fg_hgcl_forward.8} parent=0 // pred_fallthru
    _

// kernel: fg_hgcl_forward.7
$region0: #{fg_hgcl_forward.7}
  #allocation0 [shape = 'u32[]', space=smem, size = 0x4, offset = 0x4, fixed_abs, tag = 'smem constant byte address 0x4 - core index']
  #allocation1 [shape = 'u32[144,128]{1,0:T(1,128)}', space=vmem, size = 0x12000, scoped, tag = 'internal scratch']
  #allocation2 [shape = 'f32[128,128]{1,0:T(8,128)}', space=vmem, size = 0x10000, scoped, tag = 'scratch operand']
  #allocation3 [shape = 'f32[1]{0:T(128)S(6)}', space=smem, size = 0x200, scoped, tag = 'scoped memory for fg_hgcl_forward.7']
  %s0 = inlined_call_operand.vmem [shape: bf16[128,128], index: 0, kind: input, shape index: {}]
  %s1 = inlined_call_operand.vmem [shape: f32[128,128], index: 1, kind: input, shape index: {}]
  %s2 = inlined_call_operand.vmem [shape: f32[128,1], index: 2, kind: input, shape index: {}]
  %s3 = inlined_call_operand.<no memory space> [shape: f32[1], index: 3, kind: input, shape index: {}]
  %s4 = inlined_call_operand.vmem [shape: f32[128,128], index: 4, kind: output, shape index: {}]
  %s5 = sld [smem:[#allocation0]]
  $region34: #{fg_hgcl_forward.7} parent=0
    _
  %s7 = ssub.s32 1, %s5
  %s8 = scalar_select 0, %s7, %s5
  %9 = sst [smem:[#allocation3]] %s3
  // Predicated region
  $region2: #{fg_hgcl_forward.7} parent=0 // pred_check
    _
  $region3: #{fg_hgcl_forward.7} parent=0 // pred_check_branch
    %11 = sbr.rel (0) target = $region5
  $region4: #{fg_hgcl_forward.7} parent=0 // pred_region
    _
  $region5: #{fg_hgcl_forward.7} parent=0 // pred_fallthru
    _
  // Predicated region
  $region6: #{fg_hgcl_forward.7} parent=0 // pred_check
    _
  $region7: #{fg_hgcl_forward.7} parent=0 // pred_check_branch
    %13 = sbr.rel (0) target = $region9
  $region8: #{fg_hgcl_forward.7} parent=0 // pred_region
    _
  $region9: #{fg_hgcl_forward.7} parent=0 // pred_fallthru
    _
  // Predicated region
  $region10: #{fg_hgcl_forward.7} parent=0 // pred_check
    _
  $region11: #{fg_hgcl_forward.7} parent=0 // pred_check_branch
    %15 = sbr.rel (0) target = $region13
  $region12: #{fg_hgcl_forward.7} parent=0 // pred_region
    _
  $region13: #{fg_hgcl_forward.7} parent=0 // pred_fallthru
    _
  // Predicated region
  $region14: #{fg_hgcl_forward.7} parent=0 // pred_check
    _
  $region15: #{fg_hgcl_forward.7} parent=0 // pred_check_branch
    %17 = sbr.rel (0) target = $region17
  $region16: #{fg_hgcl_forward.7} parent=0 // pred_region
    _
  $region17: #{fg_hgcl_forward.7} parent=0 // pred_fallthru
    _
  %p18 = scmp.eq.s32.totalorder 0, 0
  // Predicated region
  $region18: #{fg_hgcl_forward.7} parent=0 // pred_check
    %p19 = pneg %p18
  $region19: #{fg_hgcl_forward.7} parent=0 // pred_check_branch
    %21 = sbr.rel (%p19) target = $region21
  $region20: #{fg_hgcl_forward.7} parent=0 // pred_region
    %22 = vst [vmem:[#allocation2] sm:$0xff] 0.0
    %23 = vst [vmem:[#allocation2 + $0x8] sm:$0xff] 0.0
    %24 = vst [vmem:[#allocation2 + $0x10] sm:$0xff] 0.0
    %25 = vst [vmem:[#allocation2 + $0x18] sm:$0xff] 0.0
    %26 = vst [vmem:[#allocation2 + $0x20] sm:$0xff] 0.0
    %27 = vst [vmem:[#allocation2 + $0x28] sm:$0xff] 0.0
    %28 = vst [vmem:[#allocation2 + $0x30] sm:$0xff] 0.0
    %29 = vst [vmem:[#allocation2 + $0x38] sm:$0xff] 0.0
    %30 = vst [vmem:[#allocation2 + $0x40] sm:$0xff] 0.0
    %31 = vst [vmem:[#allocation2 + $0x48] sm:$0xff] 0.0
    %32 = vst [vmem:[#allocation2 + $0x50] sm:$0xff] 0.0
    %33 = vst [vmem:[#allocation2 + $0x58] sm:$0xff] 0.0
    %34 = vst [vmem:[#allocation2 + $0x60] sm:$0xff] 0.0
    %35 = vst [vmem:[#allocation2 + $0x68] sm:$0xff] 0.0
    %36 = vst [vmem:[#allocation2 + $0x70] sm:$0xff] 0.0
    %37 = vst [vmem:[#allocation2 + $0x78] sm:$0xff] 0.0
  $region21: #{fg_hgcl_forward.7} parent=0 // pred_fallthru
    _
  %v38 = vld [vmem:[#allocation2] sm:$0xff]
  %v39 = vld [vmem:[#allocation2 + $0x8] sm:$0xff]
  %v40 = vld [vmem:[#allocation2 + $0x10] sm:$0xff]
  %v41 = vld [vmem:[#allocation2 + $0x18] sm:$0xff]
  %v42 = vld [vmem:[#allocation2 + $0x20] sm:$0xff]
  %v43 = vld [vmem:[#allocation2 + $0x28] sm:$0xff]
  %v44 = vld [vmem:[#allocation2 + $0x30] sm:$0xff]
  %v45 = vld [vmem:[#allocation2 + $0x38] sm:$0xff]
  %v46 = vld [vmem:[#allocation2 + $0x40] sm:$0xff]
  %v47 = vld [vmem:[#allocation2 + $0x48] sm:$0xff]
  %v48 = vld [vmem:[#allocation2 + $0x50] sm:$0xff]
  %v49 = vld [vmem:[#allocation2 + $0x58] sm:$0xff]
  %v50 = vld [vmem:[#allocation2 + $0x60] sm:$0xff]
  %v51 = vld [vmem:[#allocation2 + $0x68] sm:$0xff]
  %v52 = vld [vmem:[#allocation2 + $0x70] sm:$0xff]
  %v53 = vld [vmem:[#allocation2 + $0x78] sm:$0xff]
  %v54 = vld [vmem:[%s0] sm:$0xf]
  %v55 = vld [vmem:[%s0 + $0x4] sm:$0xf]
  %v56 = vld [vmem:[%s0 + $0x8] sm:$0xf]
  %v57 = vld [vmem:[%s0 + $0xc] sm:$0xf]
  %v58 = vld [vmem:[%s0 + $0x10] sm:$0xf]
  %v59 = vld [vmem:[%s0 + $0x14] sm:$0xf]
  %v60 = vld [vmem:[%s0 + $0x18] sm:$0xf]
  %v61 = vld [vmem:[%s0 + $0x1c] sm:$0xf]
  %v62 = vld [vmem:[%s0 + $0x20] sm:$0xf]
  %v63 = vld [vmem:[%s0 + $0x24] sm:$0xf]
  %v64 = vld [vmem:[%s0 + $0x28] sm:$0xf]
  %v65 = vld [vmem:[%s0 + $0x2c] sm:$0xf]
  %v66 = vld [vmem:[%s0 + $0x30] sm:$0xf]
  %v67 = vld [vmem:[%s0 + $0x34] sm:$0xf]
  %v68 = vld [vmem:[%s0 + $0x38] sm:$0xf]
  %v69 = vld [vmem:[%s0 + $0x3c] sm:$0xf]
  %v70 = vunpack.c.l.bf16 %v54
  %v71 = vunpack.c.l.bf16 %v55
  %v72 = vunpack.c.l.bf16 %v56
  %v73 = vunpack.c.l.bf16 %v57
  %v74 = vunpack.c.l.bf16 %v58
  %v75 = vunpack.c.l.bf16 %v59
  %v76 = vunpack.c.l.bf16 %v60
  %v77 = vunpack.c.l.bf16 %v61
  %v78 = vunpack.c.l.bf16 %v62
  %v79 = vunpack.c.l.bf16 %v63
  %v80 = vunpack.c.l.bf16 %v64
  %v81 = vunpack.c.l.bf16 %v65
  %v82 = vunpack.c.l.bf16 %v66
  %v83 = vunpack.c.l.bf16 %v67
  %v84 = vunpack.c.l.bf16 %v68
  %v85 = vunpack.c.l.bf16 %v69
  %v86 = vld [vmem:[%s1] sm:$0xff]
  %v87 = vld [vmem:[%s1 + $0x8] sm:$0xff]
  %v88 = vld [vmem:[%s1 + $0x10] sm:$0xff]
  %v89 = vld [vmem:[%s1 + $0x18] sm:$0xff]
  %v90 = vld [vmem:[%s1 + $0x20] sm:$0xff]
  %v91 = vld [vmem:[%s1 + $0x28] sm:$0xff]
  %v92 = vld [vmem:[%s1 + $0x30] sm:$0xff]
  %v93 = vld [vmem:[%s1 + $0x38] sm:$0xff]
  %v94 = vld [vmem:[%s1 + $0x40] sm:$0xff]
  %v95 = vld [vmem:[%s1 + $0x48] sm:$0xff]
  %v96 = vld [vmem:[%s1 + $0x50] sm:$0xff]
  %v97 = vld [vmem:[%s1 + $0x58] sm:$0xff]
  %v98 = vld [vmem:[%s1 + $0x60] sm:$0xff]
  %v99 = vld [vmem:[%s1 + $0x68] sm:$0xff]
  %v100 = vld [vmem:[%s1 + $0x70] sm:$0xff]
  %v101 = vld [vmem:[%s1 + $0x78] sm:$0xff]
  %102 = vxpose.xlu0.b32.start [1/16] %v70, 128
  %103 = vxpose.xlu0.b32.cont [2/16] %v71, 128
  %104 = vxpose.xlu0.b32.cont [3/16] %v72, 128
  %105 = vxpose.xlu0.b32.cont [4/16] %v73, 128
  %106 = vxpose.xlu0.b32.cont [5/16] %v74, 128
  %107 = vxpose.xlu0.b32.cont [6/16] %v75, 128
  %108 = vxpose.xlu0.b32.cont [7/16] %v76, 128
  %109 = vxpose.xlu0.b32.cont [8/16] %v77, 128
  %110 = vxpose.xlu0.b32.cont [9/16] %v78, 128
  %111 = vxpose.xlu0.b32.cont [10/16] %v79, 128
  %112 = vxpose.xlu0.b32.cont [11/16] %v80, 128
  %113 = vxpose.xlu0.b32.cont [12/16] %v81, 128
  %114 = vxpose.xlu0.b32.cont [13/16] %v82, 128
  %115 = vxpose.xlu0.b32.cont [14/16] %v83, 128
  %116 = vxpose.xlu0.b32.cont [15/16] %v84, 128
  %117 = vxpose.xlu0.b32.end [16/16] %v85, 128
  %v118 = vpop.trf.xlu0
  %v119 = vpop.trf.xlu0
  %v120 = vpop.trf.xlu0
  %v121 = vpop.trf.xlu0
  %v122 = vpop.trf.xlu0
  %v123 = vpop.trf.xlu0
  %v124 = vpop.trf.xlu0
  %v125 = vpop.trf.xlu0
  %v126 = vpop.trf.xlu0
  %v127 = vpop.trf.xlu0
  %v128 = vpop.trf.xlu0
  %v129 = vpop.trf.xlu0
  %v130 = vpop.trf.xlu0
  %v131 = vpop.trf.xlu0
  %v132 = vpop.trf.xlu0
  %v133 = vpop.trf.xlu0
  %134 = vmatprep.subr.mxu0 0.0
  %135 = vmatpush1.msra.mxu0 %v101
  %136 = vmatprep.subr.mxu0 0.0
  %137 = vmatpush1.msra.mxu0 %v100
  %138 = vmatprep.subr.mxu0 0.0
  %139 = vmatpush1.msra.mxu0 %v99
  %140 = vmatprep.subr.mxu0 0.0
  %141 = vmatpush1.msra.mxu0 %v98
  %142 = vmatprep.subr.mxu0 0.0
  %143 = vmatpush1.msra.mxu0 %v97
  %144 = vmatprep.subr.mxu0 0.0
  %145 = vmatpush1.msra.mxu0 %v96
  %146 = vmatprep.subr.mxu0 0.0
  %147 = vmatpush1.msra.mxu0 %v95
  %148 = vmatprep.subr.mxu0 0.0
  %149 = vmatpush1.msra.mxu0 %v94
  %150 = vmatprep.subr.mxu0 0.0
  %151 = vmatpush1.msra.mxu0 %v93
  %152 = vmatprep.subr.mxu0 0.0
  %153 = vmatpush1.msra.mxu0 %v92
  %154 = vmatprep.subr.mxu0 0.0
  %155 = vmatpush1.msra.mxu0 %v91
  %156 = vmatprep.subr.mxu0 0.0
  %157 = vmatpush1.msra.mxu0 %v90
  %158 = vmatprep.subr.mxu0 0.0
  %159 = vmatpush1.msra.mxu0 %v89
  %160 = vmatprep.subr.mxu0 0.0
  %161 = vmatpush1.msra.mxu0 %v88
  %162 = vmatprep.subr.mxu0 0.0
  %163 = vmatpush1.msra.mxu0 %v87
  %164 = vmatprep.subr.mxu0 0.0
  %165 = vmatpush1.msra.mxu0 %v86
  %166 = vmatprep.subr.mxu0 0.0
  %167 = vmatpush2.msra.mxu0 0.0
  %168 = vmatprep.subr.mxu0 0.0
  %169 = vmatpush2.msra.mxu0 0.0
  %170 = vmatprep.subr.mxu0 0.0
  %171 = vmatpush2.msra.mxu0 0.0
  %172 = vmatprep.subr.mxu0 0.0
  %173 = vmatpush2.msra.mxu0 0.0
  %174 = vmatprep.subr.mxu0 0.0
  %175 = vmatpush2.msra.mxu0 0.0
  %176 = vmatprep.subr.mxu0 0.0
  %177 = vmatpush2.msra.mxu0 0.0
  %178 = vmatprep.subr.mxu0 0.0
  %179 = vmatpush2.msra.mxu0 0.0
  %180 = vmatprep.subr.mxu0 0.0
  %181 = vmatpush2.msra.mxu0 0.0
  %182 = vmatprep.subr.mxu0 0.0
  %183 = vmatpush2.msra.mxu0 0.0
  %184 = vmatprep.subr.mxu0 0.0
  %185 = vmatpush2.msra.mxu0 0.0
  %186 = vmatprep.subr.mxu0 0.0
  %187 = vmatpush2.msra.mxu0 0.0
  %188 = vmatprep.subr.mxu0 0.0
  %189 = vmatpush2.msra.mxu0 0.0
  %190 = vmatprep.subr.mxu0 0.0
  %191 = vmatpush2.msra.mxu0 0.0
  %192 = vmatprep.subr.mxu0 0.0
  %193 = vmatpush2.msra.mxu0 0.0
  %194 = vmatprep.subr.mxu0 0.0
  %195 = vmatpush2.msra.mxu0 0.0
  %196 = vmatprep.subr.mxu0 0.0
  %197 = vmatpush2.msra.mxu0 0.0
  %198 = vmatprep.mubr.f32.mxu0 0.0
  %199 = vmatmul.mubr.f32.gmra.mxu0 %v118
  %v200 = vpop.f32.mrf.mxu0
  %v201 = vadd.f32 0.0, %v200
  %v202 = vpop.f32.mrf.mxu0
  %203 = vmatprep.mubr.f32.mxu0 0.0
  %204 = vmatmul.mubr.f32.gmra.mxu0 %v119
  %v205 = vpop.f32.mrf.mxu0
  %v206 = vadd.f32 0.0, %v205
  %v207 = vpop.f32.mrf.mxu0
  %208 = vmatprep.mubr.f32.mxu0 0.0
  %209 = vmatmul.mubr.f32.gmra.mxu0 %v120
  %v210 = vpop.f32.mrf.mxu0
  %v211 = vadd.f32 0.0, %v210
  %v212 = vpop.f32.mrf.mxu0
  %213 = vmatprep.mubr.f32.mxu0 0.0
  %214 = vmatmul.mubr.f32.gmra.mxu0 %v121
  %v215 = vpop.f32.mrf.mxu0
  %v216 = vadd.f32 0.0, %v215
  %v217 = vpop.f32.mrf.mxu0
  %218 = vmatprep.mubr.f32.mxu0 0.0
  %219 = vmatmul.mubr.f32.gmra.mxu0 %v122
  %v220 = vpop.f32.mrf.mxu0
  %v221 = vadd.f32 0.0, %v220
  %v222 = vpop.f32.mrf.mxu0
  %223 = vmatprep.mubr.f32.mxu0 0.0
  %224 = vmatmul.mubr.f32.gmra.mxu0 %v123
  %v225 = vpop.f32.mrf.mxu0
  %v226 = vadd.f32 0.0, %v225
  %v227 = vpop.f32.mrf.mxu0
  %228 = vmatprep.mubr.f32.mxu0 0.0
  %229 = vmatmul.mubr.f32.gmra.mxu0 %v124
  %v230 = vpop.f32.mrf.mxu0
  %v231 = vadd.f32 0.0, %v230
  %v232 = vpop.f32.mrf.mxu0
  %233 = vmatprep.mubr.f32.mxu0 0.0
  %234 = vmatmul.mubr.f32.gmra.mxu0 %v125
  %v235 = vpop.f32.mrf.mxu0
  %v236 = vadd.f32 0.0, %v235
  %v237 = vpop.f32.mrf.mxu0
  %238 = vmatprep.mubr.f32.mxu0 0.0
  %239 = vmatmul.mubr.f32.gmra.mxu0 %v126
  %v240 = vpop.f32.mrf.mxu0
  %v241 = vadd.f32 0.0, %v240
  %v242 = vpop.f32.mrf.mxu0
  %243 = vmatprep.mubr.f32.mxu0 0.0
  %244 = vmatmul.mubr.f32.gmra.mxu0 %v127
  %v245 = vpop.f32.mrf.mxu0
  %v246 = vadd.f32 0.0, %v245
  %v247 = vpop.f32.mrf.mxu0
  %248 = vmatprep.mubr.f32.mxu0 0.0
  %249 = vmatmul.mubr.f32.gmra.mxu0 %v128
  %v250 = vpop.f32.mrf.mxu0
  %v251 = vadd.f32 0.0, %v250
  %v252 = vpop.f32.mrf.mxu0
  %253 = vmatprep.mubr.f32.mxu0 0.0
  %254 = vmatmul.mubr.f32.gmra.mxu0 %v129
  %v255 = vpop.f32.mrf.mxu0
  %v256 = vadd.f32 0.0, %v255
  %v257 = vpop.f32.mrf.mxu0
  %258 = vmatprep.mubr.f32.mxu0 0.0
  %259 = vmatmul.mubr.f32.gmra.mxu0 %v130
  %v260 = vpop.f32.mrf.mxu0
  %v261 = vadd.f32 0.0, %v260
  %v262 = vpop.f32.mrf.mxu0
  %263 = vmatprep.mubr.f32.mxu0 0.0
  %264 = vmatmul.mubr.f32.gmra.mxu0 %v131
  %v265 = vpop.f32.mrf.mxu0
  %v266 = vadd.f32 0.0, %v265
  %v267 = vpop.f32.mrf.mxu0
  %268 = vmatprep.mubr.f32.mxu0 0.0
  %269 = vmatmul.mubr.f32.gmra.mxu0 %v132
  %v270 = vpop.f32.mrf.mxu0
  %v271 = vadd.f32 0.0, %v270
  %v272 = vpop.f32.mrf.mxu0
  %273 = vmatprep.mubr.f32.mxu0 0.0
  %274 = vmatmul.mubr.f32.gmra.mxu0 %v133
  %v275 = vpop.f32.mrf.mxu0
  %v276 = vadd.f32 0.0, %v275
  %v277 = vpop.f32.mrf.mxu0
  %278 = vdwg.mxu0
  %v279 = vadd.f32 %v38, %v201
  %v280 = vadd.f32 %v39, %v206
  %v281 = vadd.f32 %v40, %v211
  %v282 = vadd.f32 %v41, %v216
  %v283 = vadd.f32 %v42, %v221
  %v284 = vadd.f32 %v43, %v226
  %v285 = vadd.f32 %v44, %v231
  %v286 = vadd.f32 %v45, %v236
  %v287 = vadd.f32 %v46, %v241
  %v288 = vadd.f32 %v47, %v246
  %v289 = vadd.f32 %v48, %v251
  %v290 = vadd.f32 %v49, %v256
  %v291 = vadd.f32 %v50, %v261
  %v292 = vadd.f32 %v51, %v266
  %v293 = vadd.f32 %v52, %v271
  %v294 = vadd.f32 %v53, %v276
  %295 = vst [vmem:[#allocation2] sm:$0xff] %v279
  %296 = vst [vmem:[#allocation2 + $0x8] sm:$0xff] %v280
  %297 = vst [vmem:[#allocation2 + $0x10] sm:$0xff] %v281
  %298 = vst [vmem:[#allocation2 + $0x18] sm:$0xff] %v282
  %299 = vst [vmem:[#allocation2 + $0x20] sm:$0xff] %v283
  %300 = vst [vmem:[#allocation2 + $0x28] sm:$0xff] %v284
  %301 = vst [vmem:[#allocation2 + $0x30] sm:$0xff] %v285
  %302 = vst [vmem:[#allocation2 + $0x38] sm:$0xff] %v286
  %303 = vst [vmem:[#allocation2 + $0x40] sm:$0xff] %v287
  %304 = vst [vmem:[#allocation2 + $0x48] sm:$0xff] %v288
  %305 = vst [vmem:[#allocation2 + $0x50] sm:$0xff] %v289
  %306 = vst [vmem:[#allocation2 + $0x58] sm:$0xff] %v290
  %307 = vst [vmem:[#allocation2 + $0x60] sm:$0xff] %v291
  %308 = vst [vmem:[#allocation2 + $0x68] sm:$0xff] %v292
  %309 = vst [vmem:[#allocation2 + $0x70] sm:$0xff] %v293
  %310 = vst [vmem:[#allocation2 + $0x78] sm:$0xff] %v294
  // Predicated region
  $region22: #{fg_hgcl_forward.7} parent=0 // pred_check
    %p311 = pneg %p18
  $region23: #{fg_hgcl_forward.7} parent=0 // pred_check_branch
    %313 = sbr.rel (%p311) target = $region25
  $region24: #{fg_hgcl_forward.7} parent=0 // pred_region
    %s314 = sld [smem:[#allocation3]]
    %v315 = vld [vmem:[#allocation2] sm:$0xff]
    %v316 = vld [vmem:[#allocation2 + $0x8] sm:$0xff]
    %v317 = vld [vmem:[#allocation2 + $0x10] sm:$0xff]
    %v318 = vld [vmem:[#allocation2 + $0x18] sm:$0xff]
    %v319 = vld [vmem:[#allocation2 + $0x20] sm:$0xff]
    %v320 = vld [vmem:[#allocation2 + $0x28] sm:$0xff]
    %v321 = vld [vmem:[#allocation2 + $0x30] sm:$0xff]
    %v322 = vld [vmem:[#allocation2 + $0x38] sm:$0xff]
    %v323 = vld [vmem:[#allocation2 + $0x40] sm:$0xff]
    %v324 = vld [vmem:[#allocation2 + $0x48] sm:$0xff]
    %v325 = vld [vmem:[#allocation2 + $0x50] sm:$0xff]
    %v326 = vld [vmem:[#allocation2 + $0x58] sm:$0xff]
    %v327 = vld [vmem:[#allocation2 + $0x60] sm:$0xff]
    %v328 = vld [vmem:[#allocation2 + $0x68] sm:$0xff]
    %v329 = vld [vmem:[#allocation2 + $0x70] sm:$0xff]
    %v330 = vld [vmem:[#allocation2 + $0x78] sm:$0xff]
    %v331 = vld [vmem:[%s2] sm:$0xff]
    %v332 = vld [vmem:[%s2 + $0x8] sm:$0xff]
    %v333 = vld [vmem:[%s2 + $0x10] sm:$0xff]
    %v334 = vld [vmem:[%s2 + $0x18] sm:$0xff]
    %v335 = vld [vmem:[%s2 + $0x20] sm:$0xff]
    %v336 = vld [vmem:[%s2 + $0x28] sm:$0xff]
    %v337 = vld [vmem:[%s2 + $0x30] sm:$0xff]
    %v338 = vld [vmem:[%s2 + $0x38] sm:$0xff]
    %v339 = vld [vmem:[%s2 + $0x40] sm:$0xff]
    %v340 = vld [vmem:[%s2 + $0x48] sm:$0xff]
    %v341 = vld [vmem:[%s2 + $0x50] sm:$0xff]
    %v342 = vld [vmem:[%s2 + $0x58] sm:$0xff]
    %v343 = vld [vmem:[%s2 + $0x60] sm:$0xff]
    %v344 = vld [vmem:[%s2 + $0x68] sm:$0xff]
    %v345 = vld [vmem:[%s2 + $0x70] sm:$0xff]
    %v346 = vld [vmem:[%s2 + $0x78] sm:$0xff]
    %348 = vset.pattern.permute.xlu0 0
    %349 = vperm.xlu0 %348, %v331
    %v350 = vpop.permute.xlu0 %349
    %353 = vset.pattern.permute.xlu0 0
    %354 = vperm.xlu0 %353, %v332
    %v355 = vpop.permute.xlu0 %354
    %358 = vset.pattern.permute.xlu0 0
    %359 = vperm.xlu0 %358, %v333
    %v360 = vpop.permute.xlu0 %359
    %363 = vset.pattern.permute.xlu0 0
    %364 = vperm.xlu0 %363, %v334
    %v365 = vpop.permute.xlu0 %364
    %368 = vset.pattern.permute.xlu0 0
    %369 = vperm.xlu0 %368, %v335
    %v370 = vpop.permute.xlu0 %369
    %373 = vset.pattern.permute.xlu0 0
    %374 = vperm.xlu0 %373, %v336
    %v375 = vpop.permute.xlu0 %374
    %378 = vset.pattern.permute.xlu0 0
    %379 = vperm.xlu0 %378, %v337
    %v380 = vpop.permute.xlu0 %379
    %383 = vset.pattern.permute.xlu0 0
    %384 = vperm.xlu0 %383, %v338
    %v385 = vpop.permute.xlu0 %384
    %388 = vset.pattern.permute.xlu0 0
    %389 = vperm.xlu0 %388, %v339
    %v390 = vpop.permute.xlu0 %389
    %393 = vset.pattern.permute.xlu0 0
    %394 = vperm.xlu0 %393, %v340
    %v395 = vpop.permute.xlu0 %394
    %398 = vset.pattern.permute.xlu0 0
    %399 = vperm.xlu0 %398, %v341
    %v400 = vpop.permute.xlu0 %399
    %403 = vset.pattern.permute.xlu0 0
    %404 = vperm.xlu0 %403, %v342
    %v405 = vpop.permute.xlu0 %404
    %408 = vset.pattern.permute.xlu0 0
    %409 = vperm.xlu0 %408, %v343
    %v410 = vpop.permute.xlu0 %409
    %413 = vset.pattern.permute.xlu0 0
    %414 = vperm.xlu0 %413, %v344
    %v415 = vpop.permute.xlu0 %414
    %418 = vset.pattern.permute.xlu0 0
    %419 = vperm.xlu0 %418, %v345
    %v420 = vpop.permute.xlu0 %419
    %423 = vset.pattern.permute.xlu0 0
    %424 = vperm.xlu0 %423, %v346
    %v425 = vpop.permute.xlu0 %424
    %v427 = vmul.f32 %v315, %v350
    %v428 = vmul.f32 %v316, %v355
    %v429 = vmul.f32 %v317, %v360
    %v430 = vmul.f32 %v318, %v365
    %v431 = vmul.f32 %v319, %v370
    %v432 = vmul.f32 %v320, %v375
    %v433 = vmul.f32 %v321, %v380
    %v434 = vmul.f32 %v322, %v385
    %v435 = vmul.f32 %v323, %v390
    %v436 = vmul.f32 %v324, %v395
    %v437 = vmul.f32 %v325, %v400
    %v438 = vmul.f32 %v326, %v405
    %v439 = vmul.f32 %v327, %v410
    %v440 = vmul.f32 %v328, %v415
    %v441 = vmul.f32 %v329, %v420
    %v442 = vmul.f32 %v330, %v425
    %vm443 = vcmp.ge.f32.partialorder %v427, 0.0
    %vm444 = vcmp.ge.f32.partialorder %v428, 0.0
    %vm445 = vcmp.ge.f32.partialorder %v429, 0.0
    %vm446 = vcmp.ge.f32.partialorder %v430, 0.0
    %vm447 = vcmp.ge.f32.partialorder %v431, 0.0
    %vm448 = vcmp.ge.f32.partialorder %v432, 0.0
    %vm449 = vcmp.ge.f32.partialorder %v433, 0.0
    %vm450 = vcmp.ge.f32.partialorder %v434, 0.0
    %vm451 = vcmp.ge.f32.partialorder %v435, 0.0
    %vm452 = vcmp.ge.f32.partialorder %v436, 0.0
    %vm453 = vcmp.ge.f32.partialorder %v437, 0.0
    %vm454 = vcmp.ge.f32.partialorder %v438, 0.0
    %vm455 = vcmp.ge.f32.partialorder %v439, 0.0
    %vm456 = vcmp.ge.f32.partialorder %v440, 0.0
    %vm457 = vcmp.ge.f32.partialorder %v441, 0.0
    %vm458 = vcmp.ge.f32.partialorder %v442, 0.0
    %v459 = vstv %s314
    %v460 = vmul.f32 %v459, %v427
    %v461 = vmul.f32 %v459, %v428
    %v462 = vmul.f32 %v459, %v429
    %v463 = vmul.f32 %v459, %v430
    %v464 = vmul.f32 %v459, %v431
    %v465 = vmul.f32 %v459, %v432
    %v466 = vmul.f32 %v459, %v433
    %v467 = vmul.f32 %v459, %v434
    %v468 = vmul.f32 %v459, %v435
    %v469 = vmul.f32 %v459, %v436
    %v470 = vmul.f32 %v459, %v437
    %v471 = vmul.f32 %v459, %v438
    %v472 = vmul.f32 %v459, %v439
    %v473 = vmul.f32 %v459, %v440
    %v474 = vmul.f32 %v459, %v441
    %v475 = vmul.f32 %v459, %v442
    %v476 = vsel %vm443, %v427, %v460
    %v477 = vsel %vm444, %v428, %v461
    %v478 = vsel %vm445, %v429, %v462
    %v479 = vsel %vm446, %v430, %v463
    %v480 = vsel %vm447, %v431, %v464
    %v481 = vsel %vm448, %v432, %v465
    %v482 = vsel %vm449, %v433, %v466
    %v483 = vsel %vm450, %v434, %v467
    %v484 = vsel %vm451, %v435, %v468
    %v485 = vsel %vm452, %v436, %v469
    %v486 = vsel %vm453, %v437, %v470
    %v487 = vsel %vm454, %v438, %v471
    %v488 = vsel %vm455, %v439, %v472
    %v489 = vsel %vm456, %v440, %v473
    %v490 = vsel %vm457, %v441, %v474
    %v491 = vsel %vm458, %v442, %v475
    %492 = vst [vmem:[%s4] sm:$0xff] %v476
    %493 = vst [vmem:[%s4 + $0x8] sm:$0xff] %v477
    %494 = vst [vmem:[%s4 + $0x10] sm:$0xff] %v478
    %495 = vst [vmem:[%s4 + $0x18] sm:$0xff] %v479
    %496 = vst [vmem:[%s4 + $0x20] sm:$0xff] %v480
    %497 = vst [vmem:[%s4 + $0x28] sm:$0xff] %v481
    %498 = vst [vmem:[%s4 + $0x30] sm:$0xff] %v482
    %499 = vst [vmem:[%s4 + $0x38] sm:$0xff] %v483
    %500 = vst [vmem:[%s4 + $0x40] sm:$0xff] %v484
    %501 = vst [vmem:[%s4 + $0x48] sm:$0xff] %v485
    %502 = vst [vmem:[%s4 + $0x50] sm:$0xff] %v486
    %503 = vst [vmem:[%s4 + $0x58] sm:$0xff] %v487
    %504 = vst [vmem:[%s4 + $0x60] sm:$0xff] %v488
    %505 = vst [vmem:[%s4 + $0x68] sm:$0xff] %v489
    %506 = vst [vmem:[%s4 + $0x70] sm:$0xff] %v490
    %507 = vst [vmem:[%s4 + $0x78] sm:$0xff] %v491
  $region25: #{fg_hgcl_forward.7} parent=0 // pred_fallthru
    _
  // Predicated region
  $region26: #{fg_hgcl_forward.7} parent=0 // pred_check
    _
  $region27: #{fg_hgcl_forward.7} parent=0 // pred_check_branch
    %509 = sbr.rel (0) target = $region29
  $region28: #{fg_hgcl_forward.7} parent=0 // pred_region
    _
  $region29: #{fg_hgcl_forward.7} parent=0 // pred_fallthru
    _
  // Predicated region
  $region30: #{fg_hgcl_forward.7} parent=0 // pred_check
    _
  $region31: #{fg_hgcl_forward.7} parent=0 // pred_check_branch
    %511 = sbr.rel (0) target = $region33
  $region32: #{fg_hgcl_forward.7} parent=0 // pred_region
    _
  $region33: #{fg_hgcl_forward.7} parent=0 // pred_fallthru
    _

// kernel: fg_hgcl_forward.9
$region0: #{fg_hgcl_forward.9}
  #allocation0 [shape = 'u32[]', space=smem, size = 0x4, offset = 0x4, fixed_abs, tag = 'smem constant byte address 0x4 - core index']
  #allocation1 [shape = 'u32[144,128]{1,0:T(1,128)}', space=vmem, size = 0x12000, scoped, tag = 'internal scratch']
  %s0 = inlined_call_operand.vmem [shape: f32[128,128], index: 0, kind: input, shape index: {}]
  %s1 = inlined_call_operand.vmem [shape: f32[128,128], index: 1, kind: input, shape index: {}]
  %s2 = inlined_call_operand.vmem [shape: f32[1,128], index: 2, kind: input, shape index: {}]
  %s3 = inlined_call_operand.vmem [shape: f32[128,128], index: 3, kind: output, shape index: {}]
  %s4 = sld [smem:[#allocation0]]
  $region22: #{fg_hgcl_forward.9} parent=0
    _
  %s6 = ssub.s32 1, %s4
  %s7 = scalar_select 0, %s6, %s4
  // Predicated region
  $region2: #{fg_hgcl_forward.9} parent=0 // pred_check
    _
  $region3: #{fg_hgcl_forward.9} parent=0 // pred_check_branch
    %9 = sbr.rel (0) target = $region5
  $region4: #{fg_hgcl_forward.9} parent=0 // pred_region
    _
  $region5: #{fg_hgcl_forward.9} parent=0 // pred_fallthru
    _
  // Predicated region
  $region6: #{fg_hgcl_forward.9} parent=0 // pred_check
    _
  $region7: #{fg_hgcl_forward.9} parent=0 // pred_check_branch
    %11 = sbr.rel (0) target = $region9
  $region8: #{fg_hgcl_forward.9} parent=0 // pred_region
    _
  $region9: #{fg_hgcl_forward.9} parent=0 // pred_fallthru
    _
  // Predicated region
  $region10: #{fg_hgcl_forward.9} parent=0 // pred_check
    _
  $region11: #{fg_hgcl_forward.9} parent=0 // pred_check_branch
    %13 = sbr.rel (0) target = $region13
  $region12: #{fg_hgcl_forward.9} parent=0 // pred_region
    _
  $region13: #{fg_hgcl_forward.9} parent=0 // pred_fallthru
    _
  %v14 = vld [vmem:[%s0] sm:$0xff]
  %v15 = vld [vmem:[%s0 + $0x8] sm:$0xff]
  %v16 = vld [vmem:[%s0 + $0x10] sm:$0xff]
  %v17 = vld [vmem:[%s0 + $0x18] sm:$0xff]
  %v18 = vld [vmem:[%s0 + $0x20] sm:$0xff]
  %v19 = vld [vmem:[%s0 + $0x28] sm:$0xff]
  %v20 = vld [vmem:[%s0 + $0x30] sm:$0xff]
  %v21 = vld [vmem:[%s0 + $0x38] sm:$0xff]
  %v22 = vld [vmem:[%s0 + $0x40] sm:$0xff]
  %v23 = vld [vmem:[%s0 + $0x48] sm:$0xff]
  %v24 = vld [vmem:[%s0 + $0x50] sm:$0xff]
  %v25 = vld [vmem:[%s0 + $0x58] sm:$0xff]
  %v26 = vld [vmem:[%s0 + $0x60] sm:$0xff]
  %v27 = vld [vmem:[%s0 + $0x68] sm:$0xff]
  %v28 = vld [vmem:[%s0 + $0x70] sm:$0xff]
  %v29 = vld [vmem:[%s0 + $0x78] sm:$0xff]
  %v30 = vld [vmem:[%s1] sm:$0xff]
  %v31 = vld [vmem:[%s1 + $0x8] sm:$0xff]
  %v32 = vld [vmem:[%s1 + $0x10] sm:$0xff]
  %v33 = vld [vmem:[%s1 + $0x18] sm:$0xff]
  %v34 = vld [vmem:[%s1 + $0x20] sm:$0xff]
  %v35 = vld [vmem:[%s1 + $0x28] sm:$0xff]
  %v36 = vld [vmem:[%s1 + $0x30] sm:$0xff]
  %v37 = vld [vmem:[%s1 + $0x38] sm:$0xff]
  %v38 = vld [vmem:[%s1 + $0x40] sm:$0xff]
  %v39 = vld [vmem:[%s1 + $0x48] sm:$0xff]
  %v40 = vld [vmem:[%s1 + $0x50] sm:$0xff]
  %v41 = vld [vmem:[%s1 + $0x58] sm:$0xff]
  %v42 = vld [vmem:[%s1 + $0x60] sm:$0xff]
  %v43 = vld [vmem:[%s1 + $0x68] sm:$0xff]
  %v44 = vld [vmem:[%s1 + $0x70] sm:$0xff]
  %v45 = vld [vmem:[%s1 + $0x78] sm:$0xff]
  %v46 = vld [vmem:[%s2] sm:$0x1]
  %v48 = vlaneseq
  %v49 = vshrl.u32 %v48, 7
  %v50 = vsub.s32 0, %v49
  %v51 = vrot.slane %v46, %v50
  %53 = vmatprep.subr.mxu0 0.0
  %54 = vmatpush1.msra.mxu0 %v45
  %55 = vmatprep.subr.mxu0 0.0
  %56 = vmatpush1.msra.mxu0 %v44
  %57 = vmatprep.subr.mxu0 0.0
  %58 = vmatpush1.msra.mxu0 %v43
  %59 = vmatprep.subr.mxu0 0.0
  %60 = vmatpush1.msra.mxu0 %v42
  %61 = vmatprep.subr.mxu0 0.0
  %62 = vmatpush1.msra.mxu0 %v41
  %63 = vmatprep.subr.mxu0 0.0
  %64 = vmatpush1.msra.mxu0 %v40
  %65 = vmatprep.subr.mxu0 0.0
  %66 = vmatpush1.msra.mxu0 %v39
  %67 = vmatprep.subr.mxu0 0.0
  %68 = vmatpush1.msra.mxu0 %v38
  %69 = vmatprep.subr.mxu0 0.0
  %70 = vmatpush1.msra.mxu0 %v37
  %71 = vmatprep.subr.mxu0 0.0
  %72 = vmatpush1.msra.mxu0 %v36
  %73 = vmatprep.subr.mxu0 0.0
  %74 = vmatpush1.msra.mxu0 %v35
  %75 = vmatprep.subr.mxu0 0.0
  %76 = vmatpush1.msra.mxu0 %v34
  %77 = vmatprep.subr.mxu0 0.0
  %78 = vmatpush1.msra.mxu0 %v33
  %79 = vmatprep.subr.mxu0 0.0
  %80 = vmatpush1.msra.mxu0 %v32
  %81 = vmatprep.subr.mxu0 0.0
  %82 = vmatpush1.msra.mxu0 %v31
  %83 = vmatprep.subr.mxu0 0.0
  %84 = vmatpush1.msra.mxu0 %v30
  %85 = vmatprep.subr.mxu0 0.0
  %86 = vmatpush2.msra.mxu0 0.0
  %87 = vmatprep.subr.mxu0 0.0
  %88 = vmatpush2.msra.mxu0 0.0
  %89 = vmatprep.subr.mxu0 0.0
  %90 = vmatpush2.msra.mxu0 0.0
  %91 = vmatprep.subr.mxu0 0.0
  %92 = vmatpush2.msra.mxu0 0.0
  %93 = vmatprep.subr.mxu0 0.0
  %94 = vmatpush2.msra.mxu0 0.0
  %95 = vmatprep.subr.mxu0 0.0
  %96 = vmatpush2.msra.mxu0 0.0
  %97 = vmatprep.subr.mxu0 0.0
  %98 = vmatpush2.msra.mxu0 0.0
  %99 = vmatprep.subr.mxu0 0.0
  %100 = vmatpush2.msra.mxu0 0.0
  %101 = vmatprep.subr.mxu0 0.0
  %102 = vmatpush2.msra.mxu0 0.0
  %103 = vmatprep.subr.mxu0 0.0
  %104 = vmatpush2.msra.mxu0 0.0
  %105 = vmatprep.subr.mxu0 0.0
  %106 = vmatpush2.msra.mxu0 0.0
  %107 = vmatprep.subr.mxu0 0.0
  %108 = vmatpush2.msra.mxu0 0.0
  %109 = vmatprep.subr.mxu0 0.0
  %110 = vmatpush2.msra.mxu0 0.0
  %111 = vmatprep.subr.mxu0 0.0
  %112 = vmatpush2.msra.mxu0 0.0
  %113 = vmatprep.subr.mxu0 0.0
  %114 = vmatpush2.msra.mxu0 0.0
  %115 = vmatprep.subr.mxu0 0.0
  %116 = vmatpush2.msra.mxu0 0.0
  %117 = vmatprep.mubr.f32.mxu0 0.0
  %118 = vmatmul.mubr.f32.gmra.mxu0 %v14
  %v119 = vpop.f32.mrf.mxu0
  %v120 = vadd.f32 %v51, %v119
  %v121 = vpop.f32.mrf.mxu0
  %122 = vmatprep.mubr.f32.mxu0 0.0
  %123 = vmatmul.mubr.f32.gmra.mxu0 %v15
  %v124 = vpop.f32.mrf.mxu0
  %v125 = vadd.f32 %v51, %v124
  %v126 = vpop.f32.mrf.mxu0
  %127 = vmatprep.mubr.f32.mxu0 0.0
  %128 = vmatmul.mubr.f32.gmra.mxu0 %v16
  %v129 = vpop.f32.mrf.mxu0
  %v130 = vadd.f32 %v51, %v129
  %v131 = vpop.f32.mrf.mxu0
  %132 = vmatprep.mubr.f32.mxu0 0.0
  %133 = vmatmul.mubr.f32.gmra.mxu0 %v17
  %v134 = vpop.f32.mrf.mxu0
  %v135 = vadd.f32 %v51, %v134
  %v136 = vpop.f32.mrf.mxu0
  %137 = vmatprep.mubr.f32.mxu0 0.0
  %138 = vmatmul.mubr.f32.gmra.mxu0 %v18
  %v139 = vpop.f32.mrf.mxu0
  %v140 = vadd.f32 %v51, %v139
  %v141 = vpop.f32.mrf.mxu0
  %142 = vmatprep.mubr.f32.mxu0 0.0
  %143 = vmatmul.mubr.f32.gmra.mxu0 %v19
  %v144 = vpop.f32.mrf.mxu0
  %v145 = vadd.f32 %v51, %v144
  %v146 = vpop.f32.mrf.mxu0
  %147 = vmatprep.mubr.f32.mxu0 0.0
  %148 = vmatmul.mubr.f32.gmra.mxu0 %v20
  %v149 = vpop.f32.mrf.mxu0
  %v150 = vadd.f32 %v51, %v149
  %v151 = vpop.f32.mrf.mxu0
  %152 = vmatprep.mubr.f32.mxu0 0.0
  %153 = vmatmul.mubr.f32.gmra.mxu0 %v21
  %v154 = vpop.f32.mrf.mxu0
  %v155 = vadd.f32 %v51, %v154
  %v156 = vpop.f32.mrf.mxu0
  %157 = vmatprep.mubr.f32.mxu0 0.0
  %158 = vmatmul.mubr.f32.gmra.mxu0 %v22
  %v159 = vpop.f32.mrf.mxu0
  %v160 = vadd.f32 %v51, %v159
  %v161 = vpop.f32.mrf.mxu0
  %162 = vmatprep.mubr.f32.mxu0 0.0
  %163 = vmatmul.mubr.f32.gmra.mxu0 %v23
  %v164 = vpop.f32.mrf.mxu0
  %v165 = vadd.f32 %v51, %v164
  %v166 = vpop.f32.mrf.mxu0
  %167 = vmatprep.mubr.f32.mxu0 0.0
  %168 = vmatmul.mubr.f32.gmra.mxu0 %v24
  %v169 = vpop.f32.mrf.mxu0
  %v170 = vadd.f32 %v51, %v169
  %v171 = vpop.f32.mrf.mxu0
  %172 = vmatprep.mubr.f32.mxu0 0.0
  %173 = vmatmul.mubr.f32.gmra.mxu0 %v25
  %v174 = vpop.f32.mrf.mxu0
  %v175 = vadd.f32 %v51, %v174
  %v176 = vpop.f32.mrf.mxu0
  %177 = vmatprep.mubr.f32.mxu0 0.0
  %178 = vmatmul.mubr.f32.gmra.mxu0 %v26
  %v179 = vpop.f32.mrf.mxu0
  %v180 = vadd.f32 %v51, %v179
  %v181 = vpop.f32.mrf.mxu0
  %182 = vmatprep.mubr.f32.mxu0 0.0
  %183 = vmatmul.mubr.f32.gmra.mxu0 %v27
  %v184 = vpop.f32.mrf.mxu0
  %v185 = vadd.f32 %v51, %v184
  %v186 = vpop.f32.mrf.mxu0
  %187 = vmatprep.mubr.f32.mxu0 0.0
  %188 = vmatmul.mubr.f32.gmra.mxu0 %v28
  %v189 = vpop.f32.mrf.mxu0
  %v190 = vadd.f32 %v51, %v189
  %v191 = vpop.f32.mrf.mxu0
  %192 = vmatprep.mubr.f32.mxu0 0.0
  %193 = vmatmul.mubr.f32.gmra.mxu0 %v29
  %v194 = vpop.f32.mrf.mxu0
  %v195 = vadd.f32 %v51, %v194
  %v196 = vpop.f32.mrf.mxu0
  %197 = vdwg.mxu0
  %198 = vst [vmem:[%s3] sm:$0xff] %v120
  %199 = vst [vmem:[%s3 + $0x8] sm:$0xff] %v125
  %200 = vst [vmem:[%s3 + $0x10] sm:$0xff] %v130
  %201 = vst [vmem:[%s3 + $0x18] sm:$0xff] %v135
  %202 = vst [vmem:[%s3 + $0x20] sm:$0xff] %v140
  %203 = vst [vmem:[%s3 + $0x28] sm:$0xff] %v145
  %204 = vst [vmem:[%s3 + $0x30] sm:$0xff] %v150
  %205 = vst [vmem:[%s3 + $0x38] sm:$0xff] %v155
  %206 = vst [vmem:[%s3 + $0x40] sm:$0xff] %v160
  %207 = vst [vmem:[%s3 + $0x48] sm:$0xff] %v165
  %208 = vst [vmem:[%s3 + $0x50] sm:$0xff] %v170
  %209 = vst [vmem:[%s3 + $0x58] sm:$0xff] %v175
  %210 = vst [vmem:[%s3 + $0x60] sm:$0xff] %v180
  %211 = vst [vmem:[%s3 + $0x68] sm:$0xff] %v185
  %212 = vst [vmem:[%s3 + $0x70] sm:$0xff] %v190
  %213 = vst [vmem:[%s3 + $0x78] sm:$0xff] %v195
  // Predicated region
  $region14: #{fg_hgcl_forward.9} parent=0 // pred_check
    _
  $region15: #{fg_hgcl_forward.9} parent=0 // pred_check_branch
    %215 = sbr.rel (0) target = $region17
  $region16: #{fg_hgcl_forward.9} parent=0 // pred_region
    _
  $region17: #{fg_hgcl_forward.9} parent=0 // pred_fallthru
    _
  // Predicated region
  $region18: #{fg_hgcl_forward.9} parent=0 // pred_check
    _
  $region19: #{fg_hgcl_forward.9} parent=0 // pred_check_branch
    %217 = sbr.rel (0) target = $region21
  $region20: #{fg_hgcl_forward.9} parent=0 // pred_region
    _
  $region21: #{fg_hgcl_forward.9} parent=0 // pred_fallthru
    _

</llo_original>
